<compile_context>
chip_gen: v5e
topology: v5e:2x2
jax: 0.10.0
libtpu: 0.0.40
codegen_flags: <defaults>
</compile_context>

<pallas_src>
import functools

import numpy as np
import jax
import jax.numpy as jnp
from jax import lax
from jax.experimental import pallas as pl
from jax.experimental.pallas import tpu as pltpu


# ----------------------------------------------------------------------------
# Kernel: heatmap sigmoid + clamp + separable 3x3 peak suppression (CenterNet
# _sigmoid + _nms).  Block = (1, TILE_C, H, Wp); W maps to lanes, H to sublanes.
# ----------------------------------------------------------------------------
def _heat_kernel(hm_ref, sig_ref, peak_ref):
    tile_c = hm_ref.shape[1]
    h, wp = hm_ref.shape[2], hm_ref.shape[3]

    # Boundary masks: built once, reused for every channel plane in the block.
    row = lax.broadcasted_iota(jnp.int32, (h, wp), 0)
    col = lax.broadcasted_iota(jnp.int32, (h, wp), 1)
    top_edge = row == 0
    bot_edge = row == h - 1
    left_edge = col == 0
    right_edge = col == wp - 1
    neg = jnp.float32(-1.0)          # < clamp floor (1e-4): never wins a max

    # Static unroll over the (small, capped) channel tile; the rolls and
    # max/selects scale with data volume either way, but processing planes
    # independently keeps rolls strictly 2-D and prevents any cross-channel
    # peak suppression.
    for c in range(tile_c):
        x = hm_ref[0, c]                                        # (H, Wp)
        sig = jnp.clip(jax.nn.sigmoid(x.astype(jnp.float32)),
                       1e-4, 1.0 - 1e-4)

        # Separable 3x3 max pool (center included in both passes, so the
        # result is identical to the full 3x3 window).
        # lane (W) direction:
        left_n = pltpu.roll(sig, shift=1, axis=1)               # sig[r, c-1]
        right_n = pltpu.roll(sig, shift=wp - 1, axis=1)         # sig[r, c+1]
        colmax = jnp.maximum(
            sig,
            jnp.maximum(jnp.where(left_edge, neg, left_n),
                        jnp.where(right_edge, neg, right_n)))
        # sublane (H) direction:
        up_n = pltpu.roll(colmax, shift=1, axis=0)              # colmax[r-1]
        down_n = pltpu.roll(colmax, shift=h - 1, axis=0)        # colmax[r+1]
        hmax = jnp.maximum(
            colmax,
            jnp.maximum(jnp.where(top_edge, neg, up_n),
                        jnp.where(bot_edge, neg, down_n)))

        keep = hmax == sig       # compared in f32, before any downcast of sig
        sig_ref[0, c] = sig.astype(sig_ref.dtype)
        peak_ref[0, c] = jnp.where(keep, sig, jnp.float32(0.0))


def _pick_tile_c(C, H, Wp, in_bytes, max_tile=8, budget_bytes=8 * 1024 * 1024):
    # Per-channel VMEM: input (native dtype) + sig out (native dtype) +
    # peak out (f32), each double-buffered by the pipeline.
    per_chan = 2 * H * Wp * (2 * in_bytes + 4)
    best = 1
    for t in range(1, min(C, max_tile) + 1):
        if C % t == 0 and t * per_chan <= budget_bytes:
            best = t
    return best


def heat_peaks(hm):
    """hm: (B, C, H, W) logits in native dtype -> (sig, peak), both (B,C,H,W)."""
    B, C, H, W = hm.shape
    Wp = ((W + 127) // 128) * 128
    if Wp != W:
        # Pad with a very negative logit: sigmoid -> 0 -> clamped to 1e-4,
        # which can never exceed a real (clamped) value, so real peaks are
        # never suppressed; fake peaks in the pad region are sliced off below.
        hm = jnp.pad(hm, ((0, 0), (0, 0), (0, 0), (0, Wp - W)),
                     constant_values=-1e4)

    in_bytes = jnp.dtype(hm.dtype).itemsize
    tile_c = _pick_tile_c(C, H, Wp, in_bytes)
    grid = (B, C // tile_c)
    spec = pl.BlockSpec((1, tile_c, H, Wp), lambda b, g: (b, g, 0, 0))

    elems = B * C * H * Wp
    cost = pl.CostEstimate(
        flops=20 * elems,                       # clamp + 4 max + selects etc.
        transcendentals=elems,                  # one exp per sigmoid
        bytes_accessed=elems * (2 * in_bytes + 4))

    sig, peak = pl.pallas_call(
        _heat_kernel,
        out_shape=(jax.ShapeDtypeStruct((B, C, H, Wp), hm.dtype),   # sig: in dtype
                   jax.ShapeDtypeStruct((B, C, H, Wp), jnp.float32)),  # peak: f32
        grid_spec=pltpu.PrefetchScalarGridSpec(
            num_scalar_prefetch=0,
            grid=grid,
            in_specs=[spec],
            out_specs=(spec, spec)),
        compiler_params=pltpu.CompilerParams(
            dimension_semantics=("parallel", "parallel"),
            vmem_limit_bytes=32 * 1024 * 1024),   # safe on v5e/v6e/v7x
        cost_estimate=cost,
    )(hm)
    return sig[..., :W], peak[..., :W]


# ----------------------------------------------------------------------------
# Plain-JAX bbox decode + inverse affine + threshold (fuses with top_k gathers)
# ----------------------------------------------------------------------------
def _decode_and_transform(xs0, ys0, reg_k, wh_k, scores, trans, thresh):
    xs = xs0 + reg_k[..., 0]
    ys = ys0 + reg_k[..., 1]
    w = wh_k[..., 0]
    h = wh_k[..., 1]
    x1 = xs - 0.5 * w
    y1 = ys - 0.5 * h
    x2 = xs + 0.5 * w
    y2 = ys + 0.5 * h
    k = trans[:, 0:1]
    tx = trans[:, 1:2]
    ty = trans[:, 2:3]
    boxes = jnp.stack([k * x1 + tx, k * y1 + ty,
                       k * x2 + tx, k * y2 + ty], axis=-1)
    # >= matches the CenterNet-style `if score < thresh: break` filter
    # (only differs from strict > for scores exactly equal to the threshold).
    valid = scores >= thresh
    return boxes, valid


# ----------------------------------------------------------------------------
# Plain-JAX greedy NMS keep-mask (batched_nms with a single valid class;
# scores from top_k are already descending so greedy order == sorted order)
# ----------------------------------------------------------------------------
def _nms_keep(boxes, valid, iou_thresh):
    x1, y1, x2, y2 = boxes[:, 0], boxes[:, 1], boxes[:, 2], boxes[:, 3]
    area = jnp.maximum(x2 - x1, 0.0) * jnp.maximum(y2 - y1, 0.0)
    xx1 = jnp.maximum(x1[:, None], x1[None, :])
    yy1 = jnp.maximum(y1[:, None], y1[None, :])
    xx2 = jnp.minimum(x2[:, None], x2[None, :])
    yy2 = jnp.minimum(y2[:, None], y2[None, :])
    inter = jnp.maximum(xx2 - xx1, 0.0) * jnp.maximum(yy2 - yy1, 0.0)
    iou = inter / (area[:, None] + area[None, :] - inter + 1e-9)
    K = boxes.shape[0]
    idx = jnp.arange(K)

    def body(i, keep):
        sup = (iou[i] > iou_thresh) & keep[i] & (idx > i)
        return keep & (~sup)

    return lax.fori_loop(0, K, body, valid)


# ----------------------------------------------------------------------------
# PostProcess.forward equivalent
# ----------------------------------------------------------------------------
def post_process(outputs, target_sizes, *, eval_mode=True, pre_thresh=0.3,
                 out_thresh=0.4, k_element=8, filter_score=True):
    if filter_score and eval_mode:
        thresh = pre_thresh
    elif filter_score:
        thresh = out_thresh
    else:
        thresh = 0.0

    # {k: v[-1] for k, v ...} — take last intermediate level, drop 'boxes'
    out = {k: v[-1] for k, v in outputs.items() if k != 'boxes'}
    hm = out['hm']          # keep native dtype (e.g. bf16): halves HBM reads
    reg = out['reg']        # (B, 2, H, W)
    wh = out['wh']          # (B, 2, H, W)
    B, C, H, W = hm.shape
    K = k_element

    # --- heatmap sigmoid + peak NMS (Pallas kernel) ---
    sig, peak = heat_peaks(hm)

    # --- top-K peaks (equivalent to CenterNet two-stage _topk) ---
    flat = peak.reshape(B, C * H * W)
    scores, inds = lax.top_k(flat, K)                       # (B, K), descending
    clses = inds // (H * W)
    hw_inds = inds % (H * W)
    ys0 = (hw_inds // W).astype(jnp.float32)
    xs0 = (hw_inds % W).astype(jnp.float32)

    def gather_feat(feat):                                  # (B,D,H,W) -> (B,K,D)
        D = feat.shape[1]
        f = jnp.transpose(feat.reshape(B, D, H * W), (0, 2, 1))
        g = jnp.take_along_axis(f, hw_inds[:, :, None], axis=1)
        return g.astype(jnp.float32)                        # cast after gather

    reg_k = gather_feat(reg)
    wh_k = gather_feat(wh)

    # --- inverse affine params for get_affine_transform(c, s, 0, (W,H), inv=1)
    # rot=0 + max_crop: uniform scale s/W on BOTH axes (dst_dir uses dst_w
    # only), translations referencing W/2 and H/2 — matches the reference even
    # when H != W.
    hgt = target_sizes[:, 0].astype(jnp.float32)
    wid = target_sizes[:, 1].astype(jnp.float32)
    cx = wid * 0.5
    cy = hgt * 0.5
    s = jnp.maximum(hgt, wid)                               # max_crop=True
    kscale = s / float(W)
    tx = cx - kscale * (W * 0.5)
    ty = cy - kscale * (H * 0.5)
    trans = jnp.stack([kscale, tx, ty], axis=-1)            # (B, 3)

    # --- bbox decode + affine + threshold (plain jnp; XLA fuses with gathers)
    boxes, valid = _decode_and_transform(xs0, ys0, reg_k, wh_k, scores,
                                         trans, float(thresh))

    # --- batched_nms(iou=0.4) keep mask (single class: valid_ids=[1]) ---
    keep = jax.vmap(lambda b, v: _nms_keep(b, v, 0.4))(boxes, valid)
    labels = jnp.full((B, K), 1, jnp.int32)  # valid_ids=[1] -> every class maps to 1
    _ = clses                                 # only one valid id in the module

    return {'boxes': boxes, 'scores': scores, 'labels': labels,
            'keep': keep, 'heatmap': sig}


if __name__ == "__main__":
    key = jax.random.PRNGKey(0)
    L, B, C, H, W = 2, 2, 4, 16, 16
    k1, k2, k3 = jax.random.split(key, 3)
    outputs = {
        # bf16 heatmap: exercises the native-dtype path (kernel upcasts to f32
        # internally, emits sig back in bf16).
        'hm': jax.random.normal(k1, (L, B, C, H, W), jnp.float32).astype(jnp.bfloat16),
        'reg': jax.random.uniform(k2, (L, B, 2, H, W), jnp.float32),
        'wh': jax.random.uniform(k3, (L, B, 2, H, W), jnp.float32) * 4.0,
        'boxes': jnp.zeros((L, B, 4), jnp.float32),         # dropped (k != 'boxes')
    }
    target_sizes = jnp.array([[128, 128], [96, 160]], dtype=jnp.int32)

    pp = jax.jit(functools.partial(post_process, eval_mode=True, pre_thresh=0.3,
                                   out_thresh=0.4, k_element=8))
    res = pp(outputs, target_sizes)
    jax.block_until_ready(res)

    # Host-side assembly of variable-length, coco-style per-image results.
    # TODO(synk): torchvision.batched_nms index order is emulated with a fixed-
    # size keep mask (scores already descending); tracking / pre_cts heads are
    # absent in this synthetic setup, so they are None as in the reference path.
    boxes_np = np.asarray(res['boxes'])
    scores_np = np.asarray(res['scores'])
    labels_np = np.asarray(res['labels'])
    keep_np = np.asarray(res['keep'])
    heat_np = np.asarray(res['heatmap'].astype(jnp.float32))  # host convenience
    coco_results = []
    for b in range(B):
        m = keep_np[b]
        coco_results.append({
            'scores': scores_np[b][m],
            'labels': labels_np[b][m],
            'boxes': boxes_np[b][m],
            'tracking': None,
            'pre_cts': None,
            'heatmap': heat_np[b],
        })
    assert len(coco_results) == B
    print("KERNEL_OK")
</pallas_src>

<mosaic_0001>
module attributes {stable_mosaic.version = 11 : i64} {
  func.func @_heat_kernel(%arg0: i32, %arg1: i32, %arg2: memref<1x4x16x128xbf16, #tpu.memory_space<vmem>>, %arg3: memref<1x4x16x128xbf16, #tpu.memory_space<vmem>>, %arg4: memref<1x4x16x128xf32, #tpu.memory_space<vmem>>) attributes {dimension_semantics = [#tpu.dimension_semantics<parallel>, #tpu.dimension_semantics<parallel>], iteration_bounds = array<i64: 2, 1>, scalar_prefetch = 0 : i64, scratch_operands = 0 : i64, tpu.core_type = #tpu.core_type<tc>, window_params = [{transform_indices = @transform_0, window_bounds = array<i64: 1, 4, 16, 128>}, {transform_indices = @transform_1, window_bounds = array<i64: 1, 4, 16, 128>}, {transform_indices = @transform_2, window_bounds = array<i64: 1, 4, 16, 128>}]} {
    %0 = tpu.iota {dimensions = array<i32: 0>} : vector<16x128xi32>
    %1 = tpu.iota {dimensions = array<i32: 1>} : vector<16x128xi32>
    %c0_i32 = arith.constant 0 : i32
    %2 = vector.broadcast %c0_i32 : i32 to vector<16x128xi32>
    %3 = arith.cmpi eq, %0, %2 : vector<16x128xi32>
    %c15_i32 = arith.constant 15 : i32
    %4 = vector.broadcast %c15_i32 : i32 to vector<16x128xi32>
    %5 = arith.cmpi eq, %0, %4 : vector<16x128xi32>
    %c0_i32_0 = arith.constant 0 : i32
    %6 = vector.broadcast %c0_i32_0 : i32 to vector<16x128xi32>
    %7 = arith.cmpi eq, %1, %6 : vector<16x128xi32>
    %c127_i32 = arith.constant 127 : i32
    %8 = vector.broadcast %c127_i32 : i32 to vector<16x128xi32>
    %9 = arith.cmpi eq, %1, %8 : vector<16x128xi32>
    %c0 = arith.constant 0 : index
    %c0_1 = arith.constant 0 : index
    %c0_2 = arith.constant 0 : index
    %c0_3 = arith.constant 0 : index
    %10 = vector.load %arg2[%c0, %c0_1, %c0_2, %c0_3] : memref<1x4x16x128xbf16, #tpu.memory_space<vmem>>, vector<1x1x16x128xbf16>
    %11 = vector.shape_cast %10 : vector<1x1x16x128xbf16> to vector<16x128xbf16>
    %12 = arith.extf %11 : vector<16x128xbf16> to vector<16x128xf32>
    %13 = arith.negf %12 : vector<16x128xf32>
    %14 = math.exp %13 : vector<16x128xf32>
    %cst = arith.constant 1.000000e+00 : f32
    %15 = vector.broadcast %cst : f32 to vector<16x128xf32>
    %16 = arith.addf %15, %14 : vector<16x128xf32>
    %17 = arith.divf %15, %16 : vector<16x128xf32>
    %cst_4 = arith.constant 9.99999974E-5 : f32
    %cst_5 = arith.constant 0.999899983 : f32
    %18 = vector.broadcast %cst_4 : f32 to vector<16x128xf32>
    %19 = arith.maximumf %18, %17 : vector<16x128xf32>
    %20 = vector.broadcast %cst_5 : f32 to vector<16x128xf32>
    %21 = arith.minimumf %20, %19 : vector<16x128xf32>
    %c1_i32 = arith.constant 1 : i32
    %22 = tpu.dynamic_rotate %21 by %c1_i32 dim 1 : vector<16x128xf32>, i32 -> vector<16x128xf32>
    %c127_i32_6 = arith.constant 127 : i32
    %23 = tpu.dynamic_rotate %21 by %c127_i32_6 dim 1 : vector<16x128xf32>, i32 -> vector<16x128xf32>
    %cst_7 = arith.constant -1.000000e+00 : f32
    %24 = vector.broadcast %cst_7 : f32 to vector<16x128xf32>
    %25 = arith.select %7, %24, %22 : vector<16x128xi1>, vector<16x128xf32>
    %cst_8 = arith.constant -1.000000e+00 : f32
    %26 = vector.broadcast %cst_8 : f32 to vector<16x128xf32>
    %27 = arith.select %9, %26, %23 : vector<16x128xi1>, vector<16x128xf32>
    %28 = arith.maximumf %25, %27 : vector<16x128xf32>
    %29 = arith.maximumf %21, %28 : vector<16x128xf32>
    %c1_i32_9 = arith.constant 1 : i32
    %30 = tpu.dynamic_rotate %29 by %c1_i32_9 dim 0 : vector<16x128xf32>, i32 -> vector<16x128xf32>
    %c15_i32_10 = arith.constant 15 : i32
    %31 = tpu.dynamic_rotate %29 by %c15_i32_10 dim 0 : vector<16x128xf32>, i32 -> vector<16x128xf32>
    %cst_11 = arith.constant -1.000000e+00 : f32
    %32 = vector.broadcast %cst_11 : f32 to vector<16x128xf32>
    %33 = arith.select %3, %32, %30 : vector<16x128xi1>, vector<16x128xf32>
    %cst_12 = arith.constant -1.000000e+00 : f32
    %34 = vector.broadcast %cst_12 : f32 to vector<16x128xf32>
    %35 = arith.select %5, %34, %31 : vector<16x128xi1>, vector<16x128xf32>
    %36 = arith.maximumf %33, %35 : vector<16x128xf32>
    %37 = arith.maximumf %29, %36 : vector<16x128xf32>
    %38 = arith.cmpf oeq, %37, %21 : vector<16x128xf32>
    %39 = arith.truncf %21 : vector<16x128xf32> to vector<16x128xbf16>
    %c0_13 = arith.constant 0 : index
    %c0_14 = arith.constant 0 : index
    %c0_15 = arith.constant 0 : index
    %c0_16 = arith.constant 0 : index
    %40 = vector.load %arg3[%c0_13, %c0_14, %c0_15, %c0_16] : memref<1x4x16x128xbf16, #tpu.memory_space<vmem>>, vector<1x1x16x128xbf16>
    %41 = vector.shape_cast %40 : vector<1x1x16x128xbf16> to vector<16x128xbf16>
    %42 = vector.shape_cast %39 : vector<16x128xbf16> to vector<1x1x16x128xbf16>
    tpu.vector_store %arg3[%c0_13, %c0_14, %c0_15, %c0_16], %42 {strides = array<i32>} : memref<1x4x16x128xbf16, #tpu.memory_space<vmem>>, vector<1x1x16x128xbf16>,
    %cst_17 = arith.constant 0.000000e+00 : f32
    %43 = vector.broadcast %cst_17 : f32 to vector<16x128xf32>
    %44 = arith.select %38, %21, %43 : vector<16x128xi1>, vector<16x128xf32>
    %c0_18 = arith.constant 0 : index
    %c0_19 = arith.constant 0 : index
    %c0_20 = arith.constant 0 : index
    %c0_21 = arith.constant 0 : index
    %45 = vector.load %arg4[%c0_18, %c0_19, %c0_20, %c0_21] : memref<1x4x16x128xf32, #tpu.memory_space<vmem>>, vector<1x1x16x128xf32>
    %46 = vector.shape_cast %45 : vector<1x1x16x128xf32> to vector<16x128xf32>
    %47 = vector.shape_cast %44 : vector<16x128xf32> to vector<1x1x16x128xf32>
    tpu.vector_store %arg4[%c0_18, %c0_19, %c0_20, %c0_21], %47 {strides = array<i32>} : memref<1x4x16x128xf32, #tpu.memory_space<vmem>>, vector<1x1x16x128xf32>,
    %c0_22 = arith.constant 0 : index
    %c1 = arith.constant 1 : index
    %c0_23 = arith.constant 0 : index
    %c0_24 = arith.constant 0 : index
    %48 = vector.load %arg2[%c0_22, %c1, %c0_23, %c0_24] : memref<1x4x16x128xbf16, #tpu.memory_space<vmem>>, vector<1x1x16x128xbf16>
    %49 = vector.shape_cast %48 : vector<1x1x16x128xbf16> to vector<16x128xbf16>
    %50 = arith.extf %49 : vector<16x128xbf16> to vector<16x128xf32>
    %51 = arith.negf %50 : vector<16x128xf32>
    %52 = math.exp %51 : vector<16x128xf32>
    %cst_25 = arith.constant 1.000000e+00 : f32
    %53 = vector.broadcast %cst_25 : f32 to vector<16x128xf32>
    %54 = arith.addf %53, %52 : vector<16x128xf32>
    %55 = arith.divf %53, %54 : vector<16x128xf32>
    %cst_26 = arith.constant 9.99999974E-5 : f32
    %cst_27 = arith.constant 0.999899983 : f32
    %56 = vector.broadcast %cst_26 : f32 to vector<16x128xf32>
    %57 = arith.maximumf %56, %55 : vector<16x128xf32>
    %58 = vector.broadcast %cst_27 : f32 to vector<16x128xf32>
    %59 = arith.minimumf %58, %57 : vector<16x128xf32>
    %c1_i32_28 = arith.constant 1 : i32
    %60 = tpu.dynamic_rotate %59 by %c1_i32_28 dim 1 : vector<16x128xf32>, i32 -> vector<16x128xf32>
    %c127_i32_29 = arith.constant 127 : i32
    %61 = tpu.dynamic_rotate %59 by %c127_i32_29 dim 1 : vector<16x128xf32>, i32 -> vector<16x128xf32>
    %cst_30 = arith.constant -1.000000e+00 : f32
    %62 = vector.broadcast %cst_30 : f32 to vector<16x128xf32>
    %63 = arith.select %7, %62, %60 : vector<16x128xi1>, vector<16x128xf32>
    %cst_31 = arith.constant -1.000000e+00 : f32
    %64 = vector.broadcast %cst_31 : f32 to vector<16x128xf32>
    %65 = arith.select %9, %64, %61 : vector<16x128xi1>, vector<16x128xf32>
    %66 = arith.maximumf %63, %65 : vector<16x128xf32>
    %67 = arith.maximumf %59, %66 : vector<16x128xf32>
    %c1_i32_32 = arith.constant 1 : i32
    %68 = tpu.dynamic_rotate %67 by %c1_i32_32 dim 0 : vector<16x128xf32>, i32 -> vector<16x128xf32>
    %c15_i32_33 = arith.constant 15 : i32
    %69 = tpu.dynamic_rotate %67 by %c15_i32_33 dim 0 : vector<16x128xf32>, i32 -> vector<16x128xf32>
    %cst_34 = arith.constant -1.000000e+00 : f32
    %70 = vector.broadcast %cst_34 : f32 to vector<16x128xf32>
    %71 = arith.select %3, %70, %68 : vector<16x128xi1>, vector<16x128xf32>
    %cst_35 = arith.constant -1.000000e+00 : f32
    %72 = vector.broadcast %cst_35 : f32 to vector<16x128xf32>
    %73 = arith.select %5, %72, %69 : vector<16x128xi1>, vector<16x128xf32>
    %74 = arith.maximumf %71, %73 : vector<16x128xf32>
    %75 = arith.maximumf %67, %74 : vector<16x128xf32>
    %76 = arith.cmpf oeq, %75, %59 : vector<16x128xf32>
    %77 = arith.truncf %59 : vector<16x128xf32> to vector<16x128xbf16>
    %c0_36 = arith.constant 0 : index
    %c1_37 = arith.constant 1 : index
    %c0_38 = arith.constant 0 : index
    %c0_39 = arith.constant 0 : index
    %78 = vector.load %arg3[%c0_36, %c1_37, %c0_38, %c0_39] : memref<1x4x16x128xbf16, #tpu.memory_space<vmem>>, vector<1x1x16x128xbf16>
    %79 = vector.shape_cast %78 : vector<1x1x16x128xbf16> to vector<16x128xbf16>
    %80 = vector.shape_cast %77 : vector<16x128xbf16> to vector<1x1x16x128xbf16>
    tpu.vector_store %arg3[%c0_36, %c1_37, %c0_38, %c0_39], %80 {strides = array<i32>} : memref<1x4x16x128xbf16, #tpu.memory_space<vmem>>, vector<1x1x16x128xbf16>,
    %cst_40 = arith.constant 0.000000e+00 : f32
    %81 = vector.broadcast %cst_40 : f32 to vector<16x128xf32>
    %82 = arith.select %76, %59, %81 : vector<16x128xi1>, vector<16x128xf32>
    %c0_41 = arith.constant 0 : index
    %c1_42 = arith.constant 1 : index
    %c0_43 = arith.constant 0 : index
    %c0_44 = arith.constant 0 : index
    %83 = vector.load %arg4[%c0_41, %c1_42, %c0_43, %c0_44] : memref<1x4x16x128xf32, #tpu.memory_space<vmem>>, vector<1x1x16x128xf32>
    %84 = vector.shape_cast %83 : vector<1x1x16x128xf32> to vector<16x128xf32>
    %85 = vector.shape_cast %82 : vector<16x128xf32> to vector<1x1x16x128xf32>
    tpu.vector_store %arg4[%c0_41, %c1_42, %c0_43, %c0_44], %85 {strides = array<i32>} : memref<1x4x16x128xf32, #tpu.memory_space<vmem>>, vector<1x1x16x128xf32>,
    %c0_45 = arith.constant 0 : index
    %c2 = arith.constant 2 : index
    %c0_46 = arith.constant 0 : index
    %c0_47 = arith.constant 0 : index
    %86 = vector.load %arg2[%c0_45, %c2, %c0_46, %c0_47] : memref<1x4x16x128xbf16, #tpu.memory_space<vmem>>, vector<1x1x16x128xbf16>
    %87 = vector.shape_cast %86 : vector<1x1x16x128xbf16> to vector<16x128xbf16>
    %88 = arith.extf %87 : vector<16x128xbf16> to vector<16x128xf32>
    %89 = arith.negf %88 : vector<16x128xf32>
    %90 = math.exp %89 : vector<16x128xf32>
    %cst_48 = arith.constant 1.000000e+00 : f32
    %91 = vector.broadcast %cst_48 : f32 to vector<16x128xf32>
    %92 = arith.addf %91, %90 : vector<16x128xf32>
    %93 = arith.divf %91, %92 : vector<16x128xf32>
    %cst_49 = arith.constant 9.99999974E-5 : f32
    %cst_50 = arith.constant 0.999899983 : f32
    %94 = vector.broadcast %cst_49 : f32 to vector<16x128xf32>
    %95 = arith.maximumf %94, %93 : vector<16x128xf32>
    %96 = vector.broadcast %cst_50 : f32 to vector<16x128xf32>
    %97 = arith.minimumf %96, %95 : vector<16x128xf32>
    %c1_i32_51 = arith.constant 1 : i32
    %98 = tpu.dynamic_rotate %97 by %c1_i32_51 dim 1 : vector<16x128xf32>, i32 -> vector<16x128xf32>
    %c127_i32_52 = arith.constant 127 : i32
    %99 = tpu.dynamic_rotate %97 by %c127_i32_52 dim 1 : vector<16x128xf32>, i32 -> vector<16x128xf32>
    %cst_53 = arith.constant -1.000000e+00 : f32
    %100 = vector.broadcast %cst_53 : f32 to vector<16x128xf32>
    %101 = arith.select %7, %100, %98 : vector<16x128xi1>, vector<16x128xf32>
    %cst_54 = arith.constant -1.000000e+00 : f32
    %102 = vector.broadcast %cst_54 : f32 to vector<16x128xf32>
    %103 = arith.select %9, %102, %99 : vector<16x128xi1>, vector<16x128xf32>
    %104 = arith.maximumf %101, %103 : vector<16x128xf32>
    %105 = arith.maximumf %97, %104 : vector<16x128xf32>
    %c1_i32_55 = arith.constant 1 : i32
    %106 = tpu.dynamic_rotate %105 by %c1_i32_55 dim 0 : vector<16x128xf32>, i32 -> vector<16x128xf32>
    %c15_i32_56 = arith.constant 15 : i32
    %107 = tpu.dynamic_rotate %105 by %c15_i32_56 dim 0 : vector<16x128xf32>, i32 -> vector<16x128xf32>
    %cst_57 = arith.constant -1.000000e+00 : f32
    %108 = vector.broadcast %cst_57 : f32 to vector<16x128xf32>
    %109 = arith.select %3, %108, %106 : vector<16x128xi1>, vector<16x128xf32>
    %cst_58 = arith.constant -1.000000e+00 : f32
    %110 = vector.broadcast %cst_58 : f32 to vector<16x128xf32>
    %111 = arith.select %5, %110, %107 : vector<16x128xi1>, vector<16x128xf32>
    %112 = arith.maximumf %109, %111 : vector<16x128xf32>
    %113 = arith.maximumf %105, %112 : vector<16x128xf32>
    %114 = arith.cmpf oeq, %113, %97 : vector<16x128xf32>
    %115 = arith.truncf %97 : vector<16x128xf32> to vector<16x128xbf16>
    %c0_59 = arith.constant 0 : index
    %c2_60 = arith.constant 2 : index
    %c0_61 = arith.constant 0 : index
    %c0_62 = arith.constant 0 : index
    %116 = vector.load %arg3[%c0_59, %c2_60, %c0_61, %c0_62] : memref<1x4x16x128xbf16, #tpu.memory_space<vmem>>, vector<1x1x16x128xbf16>
    %117 = vector.shape_cast %116 : vector<1x1x16x128xbf16> to vector<16x128xbf16>
    %118 = vector.shape_cast %115 : vector<16x128xbf16> to vector<1x1x16x128xbf16>
    tpu.vector_store %arg3[%c0_59, %c2_60, %c0_61, %c0_62], %118 {strides = array<i32>} : memref<1x4x16x128xbf16, #tpu.memory_space<vmem>>, vector<1x1x16x128xbf16>,
    %cst_63 = arith.constant 0.000000e+00 : f32
    %119 = vector.broadcast %cst_63 : f32 to vector<16x128xf32>
    %120 = arith.select %114, %97, %119 : vector<16x128xi1>, vector<16x128xf32>
    %c0_64 = arith.constant 0 : index
    %c2_65 = arith.constant 2 : index
    %c0_66 = arith.constant 0 : index
    %c0_67 = arith.constant 0 : index
    %121 = vector.load %arg4[%c0_64, %c2_65, %c0_66, %c0_67] : memref<1x4x16x128xf32, #tpu.memory_space<vmem>>, vector<1x1x16x128xf32>
    %122 = vector.shape_cast %121 : vector<1x1x16x128xf32> to vector<16x128xf32>
    %123 = vector.shape_cast %120 : vector<16x128xf32> to vector<1x1x16x128xf32>
    tpu.vector_store %arg4[%c0_64, %c2_65, %c0_66, %c0_67], %123 {strides = array<i32>} : memref<1x4x16x128xf32, #tpu.memory_space<vmem>>, vector<1x1x16x128xf32>,
    %c0_68 = arith.constant 0 : index
    %c3 = arith.constant 3 : index
    %c0_69 = arith.constant 0 : index
    %c0_70 = arith.constant 0 : index
    %124 = vector.load %arg2[%c0_68, %c3, %c0_69, %c0_70] : memref<1x4x16x128xbf16, #tpu.memory_space<vmem>>, vector<1x1x16x128xbf16>
    %125 = vector.shape_cast %124 : vector<1x1x16x128xbf16> to vector<16x128xbf16>
    %126 = arith.extf %125 : vector<16x128xbf16> to vector<16x128xf32>
    %127 = arith.negf %126 : vector<16x128xf32>
    %128 = math.exp %127 : vector<16x128xf32>
    %cst_71 = arith.constant 1.000000e+00 : f32
    %129 = vector.broadcast %cst_71 : f32 to vector<16x128xf32>
    %130 = arith.addf %129, %128 : vector<16x128xf32>
    %131 = arith.divf %129, %130 : vector<16x128xf32>
    %cst_72 = arith.constant 9.99999974E-5 : f32
    %cst_73 = arith.constant 0.999899983 : f32
    %132 = vector.broadcast %cst_72 : f32 to vector<16x128xf32>
    %133 = arith.maximumf %132, %131 : vector<16x128xf32>
    %134 = vector.broadcast %cst_73 : f32 to vector<16x128xf32>
    %135 = arith.minimumf %134, %133 : vector<16x128xf32>
    %c1_i32_74 = arith.constant 1 : i32
    %136 = tpu.dynamic_rotate %135 by %c1_i32_74 dim 1 : vector<16x128xf32>, i32 -> vector<16x128xf32>
    %c127_i32_75 = arith.constant 127 : i32
    %137 = tpu.dynamic_rotate %135 by %c127_i32_75 dim 1 : vector<16x128xf32>, i32 -> vector<16x128xf32>
    %cst_76 = arith.constant -1.000000e+00 : f32
    %138 = vector.broadcast %cst_76 : f32 to vector<16x128xf32>
    %139 = arith.select %7, %138, %136 : vector<16x128xi1>, vector<16x128xf32>
    %cst_77 = arith.constant -1.000000e+00 : f32
    %140 = vector.broadcast %cst_77 : f32 to vector<16x128xf32>
    %141 = arith.select %9, %140, %137 : vector<16x128xi1>, vector<16x128xf32>
    %142 = arith.maximumf %139, %141 : vector<16x128xf32>
    %143 = arith.maximumf %135, %142 : vector<16x128xf32>
    %c1_i32_78 = arith.constant 1 : i32
    %144 = tpu.dynamic_rotate %143 by %c1_i32_78 dim 0 : vector<16x128xf32>, i32 -> vector<16x128xf32>
    %c15_i32_79 = arith.constant 15 : i32
    %145 = tpu.dynamic_rotate %143 by %c15_i32_79 dim 0 : vector<16x128xf32>, i32 -> vector<16x128xf32>
    %cst_80 = arith.constant -1.000000e+00 : f32
    %146 = vector.broadcast %cst_80 : f32 to vector<16x128xf32>
    %147 = arith.select %3, %146, %144 : vector<16x128xi1>, vector<16x128xf32>
    %cst_81 = arith.constant -1.000000e+00 : f32
    %148 = vector.broadcast %cst_81 : f32 to vector<16x128xf32>
    %149 = arith.select %5, %148, %145 : vector<16x128xi1>, vector<16x128xf32>
    %150 = arith.maximumf %147, %149 : vector<16x128xf32>
    %151 = arith.maximumf %143, %150 : vector<16x128xf32>
    %152 = arith.cmpf oeq, %151, %135 : vector<16x128xf32>
    %153 = arith.truncf %135 : vector<16x128xf32> to vector<16x128xbf16>
    %c0_82 = arith.constant 0 : index
    %c3_83 = arith.constant 3 : index
    %c0_84 = arith.constant 0 : index
    %c0_85 = arith.constant 0 : index
    %154 = vector.load %arg3[%c0_82, %c3_83, %c0_84, %c0_85] : memref<1x4x16x128xbf16, #tpu.memory_space<vmem>>, vector<1x1x16x128xbf16>
    %155 = vector.shape_cast %154 : vector<1x1x16x128xbf16> to vector<16x128xbf16>
    %156 = vector.shape_cast %153 : vector<16x128xbf16> to vector<1x1x16x128xbf16>
    tpu.vector_store %arg3[%c0_82, %c3_83, %c0_84, %c0_85], %156 {strides = array<i32>} : memref<1x4x16x128xbf16, #tpu.memory_space<vmem>>, vector<1x1x16x128xbf16>,
    %cst_86 = arith.constant 0.000000e+00 : f32
    %157 = vector.broadcast %cst_86 : f32 to vector<16x128xf32>
    %158 = arith.select %152, %135, %157 : vector<16x128xi1>, vector<16x128xf32>
    %c0_87 = arith.constant 0 : index
    %c3_88 = arith.constant 3 : index
    %c0_89 = arith.constant 0 : index
    %c0_90 = arith.constant 0 : index
    %159 = vector.load %arg4[%c0_87, %c3_88, %c0_89, %c0_90] : memref<1x4x16x128xf32, #tpu.memory_space<vmem>>, vector<1x1x16x128xf32>
    %160 = vector.shape_cast %159 : vector<1x1x16x128xf32> to vector<16x128xf32>
    %161 = vector.shape_cast %158 : vector<16x128xf32> to vector<1x1x16x128xf32>
    tpu.vector_store %arg4[%c0_87, %c3_88, %c0_89, %c0_90], %161 {strides = array<i32>} : memref<1x4x16x128xf32, #tpu.memory_space<vmem>>, vector<1x1x16x128xf32>,
    return
  }
  func.func @transform_0(%arg0: i32, %arg1: i32) -> (i32, i32, i32, i32) {
    %c0_i32 = arith.constant 0 : i32
    %c0_i32_0 = arith.constant 0 : i32
    %c0_i32_1 = arith.constant 0 : i32
    return %arg0, %arg1, %c0_i32, %c0_i32_0 : i32, i32, i32, i32
  }
  func.func @transform_1(%arg0: i32, %arg1: i32) -> (i32, i32, i32, i32) {
    %c0_i32 = arith.constant 0 : i32
    %c0_i32_0 = arith.constant 0 : i32
    %c0_i32_1 = arith.constant 0 : i32
    return %arg0, %arg1, %c0_i32, %c0_i32_0 : i32, i32, i32, i32
  }
  func.func @transform_2(%arg0: i32, %arg1: i32) -> (i32, i32, i32, i32) {
    %c0_i32 = arith.constant 0 : i32
    %c0_i32_0 = arith.constant 0 : i32
    %c0_i32_1 = arith.constant 0 : i32
    return %arg0, %arg1, %c0_i32, %c0_i32_0 : i32, i32, i32, i32
  }
}

</mosaic_0001>

<llo_original>
// kernel: custom-call
$region0: #{custom-call}
  #allocation0 [shape = 'u32[8,128]{1,0}', space=vmem, size = 0x1000, scoped, tag = 'scratch']
  #allocation1 [shape = 'u32[8,128]{1,0}', space=vmem, size = 0x1000, scoped, tag = 'scratch']
  #allocation2 [shape = 'u32[8,128]{1,0}', space=vmem, size = 0x1000, scoped, tag = 'scratch']
  #allocation3 [shape = 'u32[8,128]{1,0}', space=vmem, size = 0x1000, scoped, tag = 'scratch']
  #allocation4 [shape = 'u32[8,128]{1,0}', space=vmem, size = 0x1000, scoped, tag = 'scratch']
  #allocation5 [shape = 'u32[8,128]{1,0}', space=vmem, size = 0x1000, scoped, tag = 'scratch']
  #allocation6 [shape = 'u32[8,128]{1,0}', space=vmem, size = 0x1000, scoped, tag = 'scratch']
  %s0 = inlined_call_operand.vmem [shape: f32[2,1024], index: 0, kind: input, shape index: {}]
  %s1 = inlined_call_operand.vmem [shape: f32[2,8], index: 1, kind: output, shape index: {0}]
  %s2 = inlined_call_operand.vmem [shape: s32[2,8], index: 2, kind: output, shape index: {1}]
  %3 = xla_tuple %s1, %s2
  %4 = xla_tuple 2147483648, 2147483647
  $region1: #{custom-call} parent=0
    #allocation7 [shape = 'u8[4096]{0}', space=vmem, size = 0x1000, scoped, tag = 'operand span for operand 1']
    #allocation8 [shape = 'u8[1024]{0}', space=vmem, size = 0x400, scoped, tag = 'packed  for operand 1']
    #allocation9 [shape = 'u8[4096]{0}', space=vmem, size = 0x1000, scoped, tag = 'operand span for operand 2']
    #allocation10 [shape = 'u8[1024]{0}', space=vmem, size = 0x400, scoped, tag = 'packed  for operand 2']
    #allocation11 [shape = 'f32[8,2]{1,0:T(8,128)}', space=vmem, size = 0x1000, scoped, tag = 'scoped memory for custom-call']
    #allocation12 [shape = 'f32[8,2]{1,0:T(8,128)}', space=vmem, size = 0x1000, scoped, tag = 'scoped memory for custom-call']
    #allocation13 [shape = 's32[8,2]{1,0:T(8,128)}', space=vmem, size = 0x1000, scoped, tag = 'scoped memory for custom-call']
    #allocation14 [shape = 's32[8,2]{1,0:T(8,128)}', space=vmem, size = 0x1000, scoped, tag = 'scoped memory for custom-call']
    %5 = xla_tuple [#allocation7], [#allocation9]
    %6 = vst [vmem:[#allocation11] sm:$0xff] 2147483648
    %7 = vst [vmem:[#allocation13] sm:$0xff] 2147483647
    %8 = xla_tuple [#allocation11], [#allocation13]
    %9 = xla_tuple [#allocation12], [#allocation14]
    $region2: #{custom-call} parent=1
      #allocation15 [shape = 'u8[8192]{0}', space=vmem, size = 0x2000, scoped, tag = 'operand span for operand 0']
      #allocation16 [shape = 's32[2048]{0}', space=vmem, size = 0x2000, scoped, tag = 'scoped memory for custom-call']
      // Predicated region
      $region3: #{custom-call} parent=2 // pred_check
        _
      $region4: #{custom-call} parent=2 // pred_check_branch
        %11 = sbr.rel (0) target = $region6
      $region5: #{custom-call} parent=2 // pred_region
        // Predicated region
        $region7: #{custom-call} parent=5 // pred_check
          _
        $region8: #{custom-call} parent=5 // pred_check_branch
          %13 = sbr.rel (0) target = $region10
        $region9: #{custom-call} parent=5 // pred_region
          // Predicated region
          $region11: #{custom-call} parent=9 // pred_check
            _
          $region12: #{custom-call} parent=9 // pred_check_branch
            %15 = sbr.rel (0) target = $region14
          $region13: #{custom-call} parent=9 // pred_region
            loop: start=0, step=1, limit=1
            $region15: #{custom-call} parent=13 // loop_pre_header
              _
            $region16: #{custom-call} parent=13 // loop_header
              %s17 = sphi 0, %s21
              %p18 = scmp.ge.s32.totalorder %s17, 1
              %s22 = sphi %s0, %s0
              %s23 = sphi [#allocation15], [#allocation15]
            $region17: #{custom-call} parent=13 // loop_header_branch
              %20 = sbr.rel (%p18) target = $region21
            $region18: #{custom-call} parent=13 // loop_body
              %v24 = vld [vmem:[%s22] sm:$0xff]
              %25 = vst [vmem:[%s23] sm:$0xff] %v24
              %v26 = vld [vmem:[%s22 + $0x8] sm:$0xff]
              %27 = vst [vmem:[%s23 + $0x8] sm:$0xff] %v26
            $region19: #{custom-call} parent=13 // loop_footer
              %s21 = sadd.s32 1, %s17
            $region20: #{custom-call} parent=13 // loop_footer_branch
              %16 = sbr.rel target = $region16
            $region21: #{custom-call} parent=13 // loop_exit
              _
          $region14: #{custom-call} parent=9 // pred_fallthru
            _
          // Predicated region
          $region22: #{custom-call} parent=9 // pred_check
            _
          $region23: #{custom-call} parent=9 // pred_check_branch
            %29 = sbr.rel target = $region25
          $region24: #{custom-call} parent=9 // pred_region
            _
          $region25: #{custom-call} parent=9 // pred_fallthru
            _
        $region10: #{custom-call} parent=5 // pred_fallthru
          _
        %30 = vnop
      $region6: #{custom-call} parent=2 // pred_fallthru
        _
      // Predicated region
      $region26: #{custom-call} parent=2 // pred_check
        _
      $region27: #{custom-call} parent=2 // pred_check_branch
        %32 = sbr.rel (0) target = $region29
      $region28: #{custom-call} parent=2 // pred_region
        _
      $region29: #{custom-call} parent=2 // pred_fallthru
        _
      %v33 = vlaneseq
      %v34 = vand.u32 %v33, 127
      %v35 = vlaneseq
      %v36 = vshrl.u32 %v35, 7
      %v37 = vshrl.u32 %v36, 1
      %v38 = vand.u32 %v36, 1
      %v39 = vmul.u32 %v37, 128
      %v40 = vadd.s32 %v34, %v39
      %v42 = vld [vmem:[#allocation15] sm:$0xff]
      %vm43 = vcmp.lt.s32.totalorder %v42, 0
      %v44 = vsub.s32 2147483647, %v42
      %v45 = vsel %vm43, %v44, %v42
      %vm47 = vcmp.lt.s32.totalorder %v40, 1024
      %v48 = vsel %vm47, %v45, 2147483648
      %49 = vst [vmem:[#allocation15] sm:$0xff] %v48
      %s50 = scalar_lea.vmem [#allocation15], 8
      %v51 = vld [vmem:[%s50] sm:$0xff]
      %vm52 = vcmp.lt.s32.totalorder %v51, 0
      %v53 = vsub.s32 2147483647, %v51
      %v54 = vsel %vm52, %v53, %v51
      %v55 = vadd.s32 %v40, 512
      %vm56 = vcmp.lt.s32.totalorder %v55, 1024
      %v57 = vsel %vm56, %v54, 2147483648
      %58 = vst [vmem:[%s50] sm:$0xff] %v57
      %v59 = vlaneseq
      %v60 = vand.u32 %v59, 127
      %v61 = vlaneseq
      %v62 = vshrl.u32 %v61, 7
      %v63 = vshrl.u32 %v62, 1
      %v64 = vand.u32 %v62, 1
      %v65 = vmul.u32 %v63, 128
      %v66 = vadd.s32 %v60, %v65
      %69 = vst [vmem:[#allocation16] sm:$0xff] %v66
      %v70 = vadd.s32 %v66, 512
      %s71 = scalar_lea.vmem [#allocation16], 8
      %72 = vst [vmem:[%s71] sm:$0xff] %v70
      %73 = xla_tuple [#allocation15], [#allocation16]
      %74 = vst [vmem:[#allocation12] sm:$0xff] 2147483648
      %75 = vst [vmem:[#allocation14] sm:$0xff] 2147483647
      %76 = xla_tuple [#allocation12], [#allocation14]
      loop: start=0, step=1, limit=8
      $region30: #{custom-call} parent=2 // loop_pre_header
        _
      $region31: #{custom-call} parent=2 // loop_header
        %s78 = sphi 0, %s82
        %p79 = scmp.ge.s32.totalorder %s78, 8
      $region32: #{custom-call} parent=2 // loop_header_branch
        %81 = sbr.rel (%p79) target = $region36
      $region33: #{custom-call} parent=2 // loop_body
        %v83 = vld [vmem:[#allocation15] sm:$0xff]
        %v84 = vld [vmem:[#allocation16] sm:$0xff]
        %85 = xla_tuple %v83, %v84
        %s86 = scalar_lea.vmem [#allocation15], 8
        %v87 = vld [vmem:[%s86] sm:$0xff]
        %s88 = scalar_lea.vmem [#allocation16], 8
        %v89 = vld [vmem:[%s88] sm:$0xff]
        %90 = xla_tuple %v87, %v89
        %vm91 = vcmp.gt.s32.totalorder %v87, %v83
        %vm92 = vcmp.eq.s32.totalorder %v87, %v83
        %vm93 = vcmp.lt.s32.totalorder %v89, %v84
        %vm94 = vmand %vm92, %vm93
        %vm95 = vmor %vm91, %vm94
        %v96 = vsel %vm95, %v87, %v83
        %v97 = vsel %vm95, %v89, %v84
        %98 = xla_tuple %v96, %v97
        %v99 = vrot.slane %v96, 2
        %v100 = vrot.slane %v97, 2
        %101 = xla_tuple %v99, %v100
        %vm102 = vcmp.gt.s32.totalorder %v99, %v96
        %vm103 = vcmp.eq.s32.totalorder %v99, %v96
        %vm104 = vcmp.lt.s32.totalorder %v100, %v97
        %vm105 = vmand %vm103, %vm104
        %vm106 = vmor %vm102, %vm105
        %v107 = vsel %vm106, %v99, %v96
        %v108 = vsel %vm106, %v100, %v97
        %109 = xla_tuple %v107, %v108
        %v110 = vrot.slane %v107, 2
        %v111 = vrot.slane %v108, 2
        %112 = xla_tuple %v110, %v111
        %vm113 = vcmp.gt.s32.totalorder %v110, %v107
        %vm114 = vcmp.eq.s32.totalorder %v110, %v107
        %vm115 = vcmp.lt.s32.totalorder %v111, %v108
        %vm116 = vmand %vm114, %vm115
        %vm117 = vmor %vm113, %vm116
        %v118 = vsel %vm117, %v110, %v107
        %v119 = vsel %vm117, %v111, %v108
        %120 = xla_tuple %v118, %v119
        %v121 = vrot.slane %v118, 2
        %v122 = vrot.slane %v119, 2
        %123 = xla_tuple %v121, %v122
        %vm124 = vcmp.gt.s32.totalorder %v121, %v118
        %vm125 = vcmp.eq.s32.totalorder %v121, %v118
        %vm126 = vcmp.lt.s32.totalorder %v122, %v119
        %vm127 = vmand %vm125, %vm126
        %vm128 = vmor %vm124, %vm127
        %v129 = vsel %vm128, %v121, %v118
        %v130 = vsel %vm128, %v122, %v119
        %131 = xla_tuple %v129, %v130
        %132 = vxpose.xlu0.b32.start [1/16] %v129, 128
        %133 = vxpose.xlu0.b32.cont [2/16] %v129, 128
        %134 = vxpose.xlu0.b32.cont [3/16] %v129, 128
        %135 = vxpose.xlu0.b32.cont [4/16] %v129, 128
        %136 = vxpose.xlu0.b32.cont [5/16] %v129, 128
        %137 = vxpose.xlu0.b32.cont [6/16] %v129, 128
        %138 = vxpose.xlu0.b32.cont [7/16] %v129, 128
        %139 = vxpose.xlu0.b32.cont [8/16] %v129, 128
        %140 = vxpose.xlu0.b32.cont [9/16] %v129, 128
        %141 = vxpose.xlu0.b32.cont [10/16] %v129, 128
        %142 = vxpose.xlu0.b32.cont [11/16] %v129, 128
        %143 = vxpose.xlu0.b32.cont [12/16] %v129, 128
        %144 = vxpose.xlu0.b32.cont [13/16] %v129, 128
        %145 = vxpose.xlu0.b32.cont [14/16] %v129, 128
        %146 = vxpose.xlu0.b32.cont [15/16] %v129, 128
        %147 = vxpose.xlu0.b32.end [16/16] %v129, 128
        %v148 = vpop.trf.xlu0
        %v149 = vpop.trf.xlu0
        %v150 = vpop.trf.xlu0
        %v151 = vpop.trf.xlu0
        %v152 = vpop.trf.xlu0
        %v153 = vpop.trf.xlu0
        %v154 = vpop.trf.xlu0
        %v155 = vpop.trf.xlu0
        %v156 = vpop.trf.xlu0
        %v157 = vpop.trf.xlu0
        %v158 = vpop.trf.xlu0
        %v159 = vpop.trf.xlu0
        %v160 = vpop.trf.xlu0
        %v161 = vpop.trf.xlu0
        %v162 = vpop.trf.xlu0
        %v163 = vpop.trf.xlu0
        %164 = vxpose.xlu0.b32.start [1/16] %v130, 128
        %165 = vxpose.xlu0.b32.cont [2/16] %v130, 128
        %166 = vxpose.xlu0.b32.cont [3/16] %v130, 128
        %167 = vxpose.xlu0.b32.cont [4/16] %v130, 128
        %168 = vxpose.xlu0.b32.cont [5/16] %v130, 128
        %169 = vxpose.xlu0.b32.cont [6/16] %v130, 128
        %170 = vxpose.xlu0.b32.cont [7/16] %v130, 128
        %171 = vxpose.xlu0.b32.cont [8/16] %v130, 128
        %172 = vxpose.xlu0.b32.cont [9/16] %v130, 128
        %173 = vxpose.xlu0.b32.cont [10/16] %v130, 128
        %174 = vxpose.xlu0.b32.cont [11/16] %v130, 128
        %175 = vxpose.xlu0.b32.cont [12/16] %v130, 128
        %176 = vxpose.xlu0.b32.cont [13/16] %v130, 128
        %177 = vxpose.xlu0.b32.cont [14/16] %v130, 128
        %178 = vxpose.xlu0.b32.cont [15/16] %v130, 128
        %179 = vxpose.xlu0.b32.end [16/16] %v130, 128
        %v180 = vpop.trf.xlu0
        %v181 = vpop.trf.xlu0
        %v182 = vpop.trf.xlu0
        %v183 = vpop.trf.xlu0
        %v184 = vpop.trf.xlu0
        %v185 = vpop.trf.xlu0
        %v186 = vpop.trf.xlu0
        %v187 = vpop.trf.xlu0
        %v188 = vpop.trf.xlu0
        %v189 = vpop.trf.xlu0
        %v190 = vpop.trf.xlu0
        %v191 = vpop.trf.xlu0
        %v192 = vpop.trf.xlu0
        %v193 = vpop.trf.xlu0
        %v194 = vpop.trf.xlu0
        %v195 = vpop.trf.xlu0
        %196 = xla_tuple %v148, %v180
        %197 = xla_tuple %v149, %v181
        %vm198 = vcmp.gt.s32.totalorder %v149, %v148
        %vm199 = vcmp.eq.s32.totalorder %v149, %v148
        %vm200 = vcmp.lt.s32.totalorder %v181, %v180
        %vm201 = vmand %vm199, %vm200
        %vm202 = vmor %vm198, %vm201
        %v203 = vsel %vm202, %v149, %v148
        %v204 = vsel %vm202, %v181, %v180
        %205 = xla_tuple %v203, %v204
        %206 = xla_tuple %v150, %v182
        %vm207 = vcmp.gt.s32.totalorder %v150, %v203
        %vm208 = vcmp.eq.s32.totalorder %v150, %v203
        %vm209 = vcmp.lt.s32.totalorder %v182, %v204
        %vm210 = vmand %vm208, %vm209
        %vm211 = vmor %vm207, %vm210
        %v212 = vsel %vm211, %v150, %v203
        %v213 = vsel %vm211, %v182, %v204
        %214 = xla_tuple %v212, %v213
        %215 = xla_tuple %v151, %v183
        %vm216 = vcmp.gt.s32.totalorder %v151, %v212
        %vm217 = vcmp.eq.s32.totalorder %v151, %v212
        %vm218 = vcmp.lt.s32.totalorder %v183, %v213
        %vm219 = vmand %vm217, %vm218
        %vm220 = vmor %vm216, %vm219
        %v221 = vsel %vm220, %v151, %v212
        %v222 = vsel %vm220, %v183, %v213
        %223 = xla_tuple %v221, %v222
        %224 = xla_tuple %v152, %v184
        %vm225 = vcmp.gt.s32.totalorder %v152, %v221
        %vm226 = vcmp.eq.s32.totalorder %v152, %v221
        %vm227 = vcmp.lt.s32.totalorder %v184, %v222
        %vm228 = vmand %vm226, %vm227
        %vm229 = vmor %vm225, %vm228
        %v230 = vsel %vm229, %v152, %v221
        %v231 = vsel %vm229, %v184, %v222
        %232 = xla_tuple %v230, %v231
        %233 = xla_tuple %v153, %v185
        %vm234 = vcmp.gt.s32.totalorder %v153, %v230
        %vm235 = vcmp.eq.s32.totalorder %v153, %v230
        %vm236 = vcmp.lt.s32.totalorder %v185, %v231
        %vm237 = vmand %vm235, %vm236
        %vm238 = vmor %vm234, %vm237
        %v239 = vsel %vm238, %v153, %v230
        %v240 = vsel %vm238, %v185, %v231
        %241 = xla_tuple %v239, %v240
        %242 = xla_tuple %v154, %v186
        %vm243 = vcmp.gt.s32.totalorder %v154, %v239
        %vm244 = vcmp.eq.s32.totalorder %v154, %v239
        %vm245 = vcmp.lt.s32.totalorder %v186, %v240
        %vm246 = vmand %vm244, %vm245
        %vm247 = vmor %vm243, %vm246
        %v248 = vsel %vm247, %v154, %v239
        %v249 = vsel %vm247, %v186, %v240
        %250 = xla_tuple %v248, %v249
        %251 = xla_tuple %v155, %v187
        %vm252 = vcmp.gt.s32.totalorder %v155, %v248
        %vm253 = vcmp.eq.s32.totalorder %v155, %v248
        %vm254 = vcmp.lt.s32.totalorder %v187, %v249
        %vm255 = vmand %vm253, %vm254
        %vm256 = vmor %vm252, %vm255
        %v257 = vsel %vm256, %v155, %v248
        %v258 = vsel %vm256, %v187, %v249
        %259 = xla_tuple %v257, %v258
        %260 = xla_tuple %v156, %v188
        %vm261 = vcmp.gt.s32.totalorder %v156, %v257
        %vm262 = vcmp.eq.s32.totalorder %v156, %v257
        %vm263 = vcmp.lt.s32.totalorder %v188, %v258
        %vm264 = vmand %vm262, %vm263
        %vm265 = vmor %vm261, %vm264
        %v266 = vsel %vm265, %v156, %v257
        %v267 = vsel %vm265, %v188, %v258
        %268 = xla_tuple %v266, %v267
        %269 = xla_tuple %v157, %v189
        %vm270 = vcmp.gt.s32.totalorder %v157, %v266
        %vm271 = vcmp.eq.s32.totalorder %v157, %v266
        %vm272 = vcmp.lt.s32.totalorder %v189, %v267
        %vm273 = vmand %vm271, %vm272
        %vm274 = vmor %vm270, %vm273
        %v275 = vsel %vm274, %v157, %v266
        %v276 = vsel %vm274, %v189, %v267
        %277 = xla_tuple %v275, %v276
        %278 = xla_tuple %v158, %v190
        %vm279 = vcmp.gt.s32.totalorder %v158, %v275
        %vm280 = vcmp.eq.s32.totalorder %v158, %v275
        %vm281 = vcmp.lt.s32.totalorder %v190, %v276
        %vm282 = vmand %vm280, %vm281
        %vm283 = vmor %vm279, %vm282
        %v284 = vsel %vm283, %v158, %v275
        %v285 = vsel %vm283, %v190, %v276
        %286 = xla_tuple %v284, %v285
        %287 = xla_tuple %v159, %v191
        %vm288 = vcmp.gt.s32.totalorder %v159, %v284
        %vm289 = vcmp.eq.s32.totalorder %v159, %v284
        %vm290 = vcmp.lt.s32.totalorder %v191, %v285
        %vm291 = vmand %vm289, %vm290
        %vm292 = vmor %vm288, %vm291
        %v293 = vsel %vm292, %v159, %v284
        %v294 = vsel %vm292, %v191, %v285
        %295 = xla_tuple %v293, %v294
        %296 = xla_tuple %v160, %v192
        %vm297 = vcmp.gt.s32.totalorder %v160, %v293
        %vm298 = vcmp.eq.s32.totalorder %v160, %v293
        %vm299 = vcmp.lt.s32.totalorder %v192, %v294
        %vm300 = vmand %vm298, %vm299
        %vm301 = vmor %vm297, %vm300
        %v302 = vsel %vm301, %v160, %v293
        %v303 = vsel %vm301, %v192, %v294
        %304 = xla_tuple %v302, %v303
        %305 = xla_tuple %v161, %v193
        %vm306 = vcmp.gt.s32.totalorder %v161, %v302
        %vm307 = vcmp.eq.s32.totalorder %v161, %v302
        %vm308 = vcmp.lt.s32.totalorder %v193, %v303
        %vm309 = vmand %vm307, %vm308
        %vm310 = vmor %vm306, %vm309
        %v311 = vsel %vm310, %v161, %v302
        %v312 = vsel %vm310, %v193, %v303
        %313 = xla_tuple %v311, %v312
        %314 = xla_tuple %v162, %v194
        %vm315 = vcmp.gt.s32.totalorder %v162, %v311
        %vm316 = vcmp.eq.s32.totalorder %v162, %v311
        %vm317 = vcmp.lt.s32.totalorder %v194, %v312
        %vm318 = vmand %vm316, %vm317
        %vm319 = vmor %vm315, %vm318
        %v320 = vsel %vm319, %v162, %v311
        %v321 = vsel %vm319, %v194, %v312
        %322 = xla_tuple %v320, %v321
        %323 = xla_tuple %v163, %v195
        %vm324 = vcmp.gt.s32.totalorder %v163, %v320
        %vm325 = vcmp.eq.s32.totalorder %v163, %v320
        %vm326 = vcmp.lt.s32.totalorder %v195, %v321
        %vm327 = vmand %vm325, %vm326
        %vm328 = vmor %vm324, %vm327
        %v329 = vsel %vm328, %v163, %v320
        %v330 = vsel %vm328, %v195, %v321
        %331 = xla_tuple %v329, %v330
        %v332 = vrot.slane %v329, 1
        %v333 = vrot.slane %v330, 1
        %334 = xla_tuple %v332, %v333
        %vm335 = vcmp.gt.s32.totalorder %v332, %v329
        %vm336 = vcmp.eq.s32.totalorder %v332, %v329
        %vm337 = vcmp.lt.s32.totalorder %v333, %v330
        %vm338 = vmand %vm336, %vm337
        %vm339 = vmor %vm335, %vm338
        %v340 = vsel %vm339, %v332, %v329
        %v341 = vsel %vm339, %v333, %v330
        %342 = xla_tuple %v340, %v341
        %v343 = vrot.slane %v340, 1
        %v344 = vrot.slane %v341, 1
        %345 = xla_tuple %v343, %v344
        %vm346 = vcmp.gt.s32.totalorder %v343, %v340
        %vm347 = vcmp.eq.s32.totalorder %v343, %v340
        %vm348 = vcmp.lt.s32.totalorder %v344, %v341
        %vm349 = vmand %vm347, %vm348
        %vm350 = vmor %vm346, %vm349
        %v351 = vsel %vm350, %v343, %v340
        %v352 = vsel %vm350, %v344, %v341
        %353 = xla_tuple %v351, %v352
        %v354 = vrot.slane %v351, 1
        %v355 = vrot.slane %v352, 1
        %356 = xla_tuple %v354, %v355
        %vm357 = vcmp.gt.s32.totalorder %v354, %v351
        %vm358 = vcmp.eq.s32.totalorder %v354, %v351
        %vm359 = vcmp.lt.s32.totalorder %v355, %v352
        %vm360 = vmand %vm358, %vm359
        %vm361 = vmor %vm357, %vm360
        %v362 = vsel %vm361, %v354, %v351
        %v363 = vsel %vm361, %v355, %v352
        %364 = xla_tuple %v362, %v363
        %v365 = vrot.slane %v362, 1
        %v366 = vrot.slane %v363, 1
        %367 = xla_tuple %v365, %v366
        %vm368 = vcmp.gt.s32.totalorder %v365, %v362
        %vm369 = vcmp.eq.s32.totalorder %v365, %v362
        %vm370 = vcmp.lt.s32.totalorder %v366, %v363
        %vm371 = vmand %vm369, %vm370
        %vm372 = vmor %vm368, %vm371
        %v373 = vsel %vm372, %v365, %v362
        %v374 = vsel %vm372, %v366, %v363
        %375 = xla_tuple %v373, %v374
        %v376 = vrot.slane %v373, 1
        %v377 = vrot.slane %v374, 1
        %378 = xla_tuple %v376, %v377
        %vm379 = vcmp.gt.s32.totalorder %v376, %v373
        %vm380 = vcmp.eq.s32.totalorder %v376, %v373
        %vm381 = vcmp.lt.s32.totalorder %v377, %v374
        %vm382 = vmand %vm380, %vm381
        %vm383 = vmor %vm379, %vm382
        %v384 = vsel %vm383, %v376, %v373
        %v385 = vsel %vm383, %v377, %v374
        %386 = xla_tuple %v384, %v385
        %v387 = vrot.slane %v384, 1
        %v388 = vrot.slane %v385, 1
        %389 = xla_tuple %v387, %v388
        %vm390 = vcmp.gt.s32.totalorder %v387, %v384
        %vm391 = vcmp.eq.s32.totalorder %v387, %v384
        %vm392 = vcmp.lt.s32.totalorder %v388, %v385
        %vm393 = vmand %vm391, %vm392
        %vm394 = vmor %vm390, %vm393
        %v395 = vsel %vm394, %v387, %v384
        %v396 = vsel %vm394, %v388, %v385
        %397 = xla_tuple %v395, %v396
        %v398 = vrot.slane %v395, 1
        %v399 = vrot.slane %v396, 1
        %400 = xla_tuple %v398, %v399
        %vm401 = vcmp.gt.s32.totalorder %v398, %v395
        %vm402 = vcmp.eq.s32.totalorder %v398, %v395
        %vm403 = vcmp.lt.s32.totalorder %v399, %v396
        %vm404 = vmand %vm402, %vm403
        %vm405 = vmor %vm401, %vm404
        %v406 = vsel %vm405, %v398, %v395
        %v407 = vsel %vm405, %v399, %v396
        %408 = xla_tuple %v406, %v407
        %s409 = scalar_lea.vmem [#allocation12], %s78
        %410 = vst [vmem:[%s409] sm:$0x1] %v406
        %s411 = scalar_lea.vmem [#allocation14], %s78
        %412 = vst [vmem:[%s411] sm:$0x1] %v407
        %413 = xla_tuple %410, %412
        %414 = vxpose.xlu0.b32.start [1/16] %v407, 128
        %415 = vxpose.xlu0.b32.cont [2/16] 0.0, 128
        %416 = vxpose.xlu0.b32.cont [3/16] 0.0, 128
        %417 = vxpose.xlu0.b32.cont [4/16] 0.0, 128
        %418 = vxpose.xlu0.b32.cont [5/16] 0.0, 128
        %419 = vxpose.xlu0.b32.cont [6/16] 0.0, 128
        %420 = vxpose.xlu0.b32.cont [7/16] 0.0, 128
        %421 = vxpose.xlu0.b32.cont [8/16] 0.0, 128
        %422 = vxpose.xlu0.b32.cont [9/16] 0.0, 128
        %423 = vxpose.xlu0.b32.cont [10/16] 0.0, 128
        %424 = vxpose.xlu0.b32.cont [11/16] 0.0, 128
        %425 = vxpose.xlu0.b32.cont [12/16] 0.0, 128
        %426 = vxpose.xlu0.b32.cont [13/16] 0.0, 128
        %427 = vxpose.xlu0.b32.cont [14/16] 0.0, 128
        %428 = vxpose.xlu0.b32.cont [15/16] 0.0, 128
        %429 = vxpose.xlu0.b32.end [16/16] 0.0, 128
        %v430 = vpop.trf.xlu0
        %v431 = vpop.trf.xlu0
        %v432 = vpop.trf.xlu0
        %v433 = vpop.trf.xlu0
        %v434 = vpop.trf.xlu0
        %v435 = vpop.trf.xlu0
        %v436 = vpop.trf.xlu0
        %v437 = vpop.trf.xlu0
        %v438 = vpop.trf.xlu0
        %v439 = vpop.trf.xlu0
        %v440 = vpop.trf.xlu0
        %v441 = vpop.trf.xlu0
        %v442 = vpop.trf.xlu0
        %v443 = vpop.trf.xlu0
        %v444 = vpop.trf.xlu0
        %v445 = vpop.trf.xlu0
        %s446 = vtos %v430
        %s447 = sshrl.u32 %s446, 9
        %p448 = scmp.lt.s32.totalorder %s446, 0
        %s449 = ssub.s32 0, %s446
        %s450 = scalar_select %p448, %s449, %s446
        %s451 = sand.u32 %s450, 511
        %s452 = ssub.s32 0, %s451
        %s453 = scalar_select %p448, %s452, %s451
        %s454 = sshrl.u32 %s453, 7
        %s455 = smul.u32 %s454, 256
        %s456 = sand.u32 %s453, 127
        %s457 = sadd.s32 %s455, %s456
        %v458 = vlaneseq
        %v459 = vstv %s457
        %vm461 = vcmp.eq.s32.totalorder %v458, %v459
        %s462 = smul.addr %s447, 8
        %s463 = scalar_lea.vmem [#allocation15], %s462
        %464 = vst.msk [vmem:[%s463] sm:$0xff] %vm461, 2147483648
        %s465 = smul.addr %s447, 8
        %s466 = scalar_lea.vmem [#allocation16], %s465
        %467 = vst.msk [vmem:[%s466] sm:$0xff] %vm461, 2147483647
        %468 = xla_tuple %464, %467
        %v469 = vrot.slane %v430, 1
        %s470 = vtos %v469
        %s471 = sshrl.u32 %s470, 9
        %p472 = scmp.lt.s32.totalorder %s470, 0
        %s473 = ssub.s32 0, %s470
        %s474 = scalar_select %p472, %s473, %s470
        %s475 = sand.u32 %s474, 511
        %s476 = ssub.s32 0, %s475
        %s477 = scalar_select %p472, %s476, %s475
        %s478 = sshrl.u32 %s477, 7
        %s479 = smul.u32 %s478, 256
        %s480 = sand.u32 %s477, 127
        %s481 = sadd.s32 %s479, %s480
        %v482 = vlaneseq
        %v483 = vstv %s481
        %v484 = vadd.s32 %v483, 128
        %vm485 = vcmp.eq.s32.totalorder %v482, %v484
        %s486 = smul.addr %s471, 8
        %s487 = scalar_lea.vmem [#allocation15], %s486
        %488 = vst.msk [vmem:[%s487] sm:$0xff] %vm485, 2147483648
        %s489 = smul.addr %s471, 8
        %s490 = scalar_lea.vmem [#allocation16], %s489
        %491 = vst.msk [vmem:[%s490] sm:$0xff] %vm485, 2147483647
        %492 = xla_tuple %488, %491
        %v493 = vrot.slane %v469, 1
      $region34: #{custom-call} parent=2 // loop_footer
        %s82 = sadd.s32 1, %s78
      $region35: #{custom-call} parent=2 // loop_footer_branch
        %77 = sbr.rel target = $region31
      $region36: #{custom-call} parent=2 // loop_exit
        _
      %s494 = scalar_lea.vmem [#allocation12], 7
      %v495 = vld [vmem:[%s494] ss:$-1 sm:$0xff]
      %s496 = scalar_lea.vmem [#allocation12], 7
      %v497 = vld [vmem:[%s496] ss:$-1 sm:$0xff]
      %498 = vst [vmem:[#allocation12] sm:$0xff] %v497
      %499 = vst [vmem:[#allocation12] sm:$0xff] %v495
      %s500 = scalar_lea.vmem [#allocation14], 7
      %v501 = vld [vmem:[%s500] ss:$-1 sm:$0xff]
      %s502 = scalar_lea.vmem [#allocation14], 7
      %v503 = vld [vmem:[%s502] ss:$-1 sm:$0xff]
      %504 = vst [vmem:[#allocation14] sm:$0xff] %v503
      %505 = vst [vmem:[#allocation14] sm:$0xff] %v501
      %506 = xla_tuple %499, %505
      %v507 = vld [vmem:[#allocation11] sm:$0xff]
      %v508 = vld [vmem:[#allocation13] sm:$0xff]
      %509 = xla_tuple %v507, %v508
      %v510 = vld [vmem:[#allocation12] sm:$0xff]
      %v511 = vld [vmem:[#allocation14] sm:$0xff]
      %512 = xla_tuple %v510, %v511
      %vm513 = vcmp.gt.s32.totalorder %v507, %v510
      %vm514 = vcmp.eq.s32.totalorder %v507, %v510
      %vm515 = vcmp.lt.s32.totalorder %v508, %v511
      %vm516 = vmand %vm514, %vm515
      %vm517 = vmor %vm513, %vm516
      %v518 = vsel %vm517, %v507, %v510
      %519 = vst [vmem:[#allocation11] sm:$0xff] %v518
      %v520 = vsel %vm517, %v510, %v507
      %521 = vst [vmem:[#allocation12] sm:$0xff] %v520
      %v522 = vsel %vm517, %v508, %v511
      %523 = vst [vmem:[#allocation13] sm:$0xff] %v522
      %v524 = vsel %vm517, %v511, %v508
      %525 = vst [vmem:[#allocation14] sm:$0xff] %v524
      %526 = xla_tuple %521, %525
      %527 = xla_tuple [#allocation11], [#allocation13]
      %v528 = vld [vmem:[#allocation11] sm:$0xff]
      %v529 = vld [vmem:[#allocation13] sm:$0xff]
      %530 = xla_tuple %v528, %v529
      %v532 = vunpack.c.l.s4 839939668
      %v533 = vunpack.c.0.s8 %v532
      %v534 = vperm.slane %v528, %v533
      %v536 = vunpack.c.l.s4 839939668
      %v537 = vunpack.c.0.s8 %v536
      %v538 = vperm.slane %v529, %v537
      %539 = xla_tuple %v534, %v538
      %vm540 = vcmp.gt.s32.totalorder %v528, %v534
      %vm541 = vcmp.eq.s32.totalorder %v528, %v534
      %vm542 = vcmp.lt.s32.totalorder %v529, %v538
      %vm543 = vmand %vm541, %vm542
      %vm544 = vmor %vm540, %vm543
      %v545 = vlaneseq
      %v546 = vshrl.u32 %v545, 7
      %v547 = vand.u32 %v546, 4
      %vm548 = vcmp.ne.s32.totalorder %v547, 0
      %vm549 = vmxor %vm544, %vm548
      %v550 = vsel %vm549, %v528, %v534
      %v551 = vsel %vm549, %v529, %v538
      %552 = xla_tuple %v550, %v551
      %v554 = vunpack.c.l.s4 1417023538
      %v555 = vunpack.c.0.s8 %v554
      %v556 = vperm.slane %v550, %v555
      %v558 = vunpack.c.l.s4 1417023538
      %v559 = vunpack.c.0.s8 %v558
      %v560 = vperm.slane %v551, %v559
      %561 = xla_tuple %v556, %v560
      %vm562 = vcmp.gt.s32.totalorder %v550, %v556
      %vm563 = vcmp.eq.s32.totalorder %v550, %v556
      %vm564 = vcmp.lt.s32.totalorder %v551, %v560
      %vm565 = vmand %vm563, %vm564
      %vm566 = vmor %vm562, %vm565
      %v567 = vlaneseq
      %v568 = vshrl.u32 %v567, 7
      %v569 = vand.u32 %v568, 2
      %vm570 = vcmp.ne.s32.totalorder %v569, 0
      %vm571 = vmxor %vm566, %vm570
      %v572 = vsel %vm571, %v550, %v556
      %v573 = vsel %vm571, %v551, %v560
      %574 = xla_tuple %v572, %v573
      %v576 = vunpack.c.l.s4 1732584193
      %v577 = vunpack.c.0.s8 %v576
      %v578 = vperm.slane %v572, %v577
      %v580 = vunpack.c.l.s4 1732584193
      %v581 = vunpack.c.0.s8 %v580
      %v582 = vperm.slane %v573, %v581
      %583 = xla_tuple %v578, %v582
      %vm584 = vcmp.gt.s32.totalorder %v572, %v578
      %vm585 = vcmp.eq.s32.totalorder %v572, %v578
      %vm586 = vcmp.lt.s32.totalorder %v573, %v582
      %vm587 = vmand %vm585, %vm586
      %vm588 = vmor %vm584, %vm587
      %v589 = vlaneseq
      %v590 = vshrl.u32 %v589, 7
      %v591 = vand.u32 %v590, 1
      %vm592 = vcmp.ne.s32.totalorder %v591, 0
      %vm593 = vmxor %vm588, %vm592
      %v594 = vsel %vm593, %v572, %v578
      %v595 = vsel %vm593, %v573, %v582
      %596 = xla_tuple %v594, %v595
      %597 = vst [vmem:[#allocation11] sm:$0xff] %v594
      %598 = vst [vmem:[#allocation13] sm:$0xff] %v595
      %599 = xla_tuple %597, %598
      %v600 = vld [vmem:[#allocation11] sm:$0xff]
      %v601 = vld [vmem:[#allocation13] sm:$0xff]
      %602 = xla_tuple %v600, %v601
      %v604 = vunpack.c.l.s4 839939668
      %v605 = vunpack.c.0.s8 %v604
      %v606 = vperm.slane %v600, %v605
      %v608 = vunpack.c.l.s4 839939668
      %v609 = vunpack.c.0.s8 %v608
      %v610 = vperm.slane %v601, %v609
      %611 = xla_tuple %v606, %v610
      %vm612 = vcmp.gt.s32.totalorder %v600, %v606
      %vm613 = vcmp.eq.s32.totalorder %v600, %v606
      %vm614 = vcmp.lt.s32.totalorder %v601, %v610
      %vm615 = vmand %vm613, %vm614
      %vm616 = vmor %vm612, %vm615
      %v617 = vlaneseq
      %v618 = vshrl.u32 %v617, 7
      %v619 = vand.u32 %v618, 4
      %vm620 = vcmp.ne.s32.totalorder %v619, 0
      %vm621 = vmxor %vm616, %vm620
      %v622 = vsel %vm621, %v600, %v606
      %v623 = vsel %vm621, %v601, %v610
      %624 = xla_tuple %v622, %v623
      %v626 = vunpack.c.l.s4 1417023538
      %v627 = vunpack.c.0.s8 %v626
      %v628 = vperm.slane %v622, %v627
      %v630 = vunpack.c.l.s4 1417023538
      %v631 = vunpack.c.0.s8 %v630
      %v632 = vperm.slane %v623, %v631
      %633 = xla_tuple %v628, %v632
      %vm634 = vcmp.gt.s32.totalorder %v622, %v628
      %vm635 = vcmp.eq.s32.totalorder %v622, %v628
      %vm636 = vcmp.lt.s32.totalorder %v623, %v632
      %vm637 = vmand %vm635, %vm636
      %vm638 = vmor %vm634, %vm637
      %v639 = vlaneseq
      %v640 = vshrl.u32 %v639, 7
      %v641 = vand.u32 %v640, 2
      %vm642 = vcmp.ne.s32.totalorder %v641, 0
      %vm643 = vmxor %vm638, %vm642
      %v644 = vsel %vm643, %v622, %v628
      %v645 = vsel %vm643, %v623, %v632
      %646 = xla_tuple %v644, %v645
      %v648 = vunpack.c.l.s4 1732584193
      %v649 = vunpack.c.0.s8 %v648
      %v650 = vperm.slane %v644, %v649
      %v652 = vunpack.c.l.s4 1732584193
      %v653 = vunpack.c.0.s8 %v652
      %v654 = vperm.slane %v645, %v653
      %655 = xla_tuple %v650, %v654
      %vm656 = vcmp.gt.s32.totalorder %v644, %v650
      %vm657 = vcmp.eq.s32.totalorder %v644, %v650
      %vm658 = vcmp.lt.s32.totalorder %v645, %v654
      %vm659 = vmand %vm657, %vm658
      %vm660 = vmor %vm656, %vm659
      %v661 = vlaneseq
      %v662 = vshrl.u32 %v661, 7
      %v663 = vand.u32 %v662, 1
      %vm664 = vcmp.ne.s32.totalorder %v663, 0
      %vm665 = vmxor %vm660, %vm664
      %v666 = vsel %vm665, %v644, %v650
      %v667 = vsel %vm665, %v645, %v654
      %668 = xla_tuple %v666, %v667
      %669 = vst [vmem:[#allocation11] sm:$0xff] %v666
      %670 = vst [vmem:[#allocation13] sm:$0xff] %v667
      %671 = xla_tuple %669, %670
      %672 = xla_tuple [#allocation12], [#allocation14]
      %v673 = vld [vmem:[#allocation12] sm:$0xff]
      %v674 = vld [vmem:[#allocation14] sm:$0xff]
      %675 = xla_tuple %v673, %v674
      %v677 = vunpack.c.l.s4 839939668
      %v678 = vunpack.c.0.s8 %v677
      %v679 = vperm.slane %v673, %v678
      %v681 = vunpack.c.l.s4 839939668
      %v682 = vunpack.c.0.s8 %v681
      %v683 = vperm.slane %v674, %v682
      %684 = xla_tuple %v679, %v683
      %vm685 = vcmp.gt.s32.totalorder %v673, %v679
      %vm686 = vcmp.eq.s32.totalorder %v673, %v679
      %vm687 = vcmp.lt.s32.totalorder %v674, %v683
      %vm688 = vmand %vm686, %vm687
      %vm689 = vmor %vm685, %vm688
      %v690 = vlaneseq
      %v691 = vshrl.u32 %v690, 7
      %v692 = vand.u32 %v691, 4
      %vm693 = vcmp.ne.s32.totalorder %v692, 0
      %vm694 = vmxor %vm689, %vm693
      %v695 = vsel %vm694, %v673, %v679
      %v696 = vsel %vm694, %v674, %v683
      %697 = xla_tuple %v695, %v696
      %v699 = vunpack.c.l.s4 1417023538
      %v700 = vunpack.c.0.s8 %v699
      %v701 = vperm.slane %v695, %v700
      %v703 = vunpack.c.l.s4 1417023538
      %v704 = vunpack.c.0.s8 %v703
      %v705 = vperm.slane %v696, %v704
      %706 = xla_tuple %v701, %v705
      %vm707 = vcmp.gt.s32.totalorder %v695, %v701
      %vm708 = vcmp.eq.s32.totalorder %v695, %v701
      %vm709 = vcmp.lt.s32.totalorder %v696, %v705
      %vm710 = vmand %vm708, %vm709
      %vm711 = vmor %vm707, %vm710
      %v712 = vlaneseq
      %v713 = vshrl.u32 %v712, 7
      %v714 = vand.u32 %v713, 2
      %vm715 = vcmp.ne.s32.totalorder %v714, 0
      %vm716 = vmxor %vm711, %vm715
      %v717 = vsel %vm716, %v695, %v701
      %v718 = vsel %vm716, %v696, %v705
      %719 = xla_tuple %v717, %v718
      %v721 = vunpack.c.l.s4 1732584193
      %v722 = vunpack.c.0.s8 %v721
      %v723 = vperm.slane %v717, %v722
      %v725 = vunpack.c.l.s4 1732584193
      %v726 = vunpack.c.0.s8 %v725
      %v727 = vperm.slane %v718, %v726
      %728 = xla_tuple %v723, %v727
      %vm729 = vcmp.gt.s32.totalorder %v717, %v723
      %vm730 = vcmp.eq.s32.totalorder %v717, %v723
      %vm731 = vcmp.lt.s32.totalorder %v718, %v727
      %vm732 = vmand %vm730, %vm731
      %vm733 = vmor %vm729, %vm732
      %v734 = vlaneseq
      %v735 = vshrl.u32 %v734, 7
      %v736 = vand.u32 %v735, 1
      %vm737 = vcmp.ne.s32.totalorder %v736, 0
      %vm738 = vmxor %vm733, %vm737
      %v739 = vsel %vm738, %v717, %v723
      %v740 = vsel %vm738, %v718, %v727
      %741 = xla_tuple %v739, %v740
      %742 = vst [vmem:[#allocation12] sm:$0xff] %v739
      %743 = vst [vmem:[#allocation14] sm:$0xff] %v740
      %744 = xla_tuple %742, %743
      %v745 = vld [vmem:[#allocation12] sm:$0xff]
      %v746 = vld [vmem:[#allocation14] sm:$0xff]
      %747 = xla_tuple %v745, %v746
      %v749 = vunpack.c.l.s4 839939668
      %v750 = vunpack.c.0.s8 %v749
      %v751 = vperm.slane %v745, %v750
      %v753 = vunpack.c.l.s4 839939668
      %v754 = vunpack.c.0.s8 %v753
      %v755 = vperm.slane %v746, %v754
      %756 = xla_tuple %v751, %v755
      %vm757 = vcmp.gt.s32.totalorder %v745, %v751
      %vm758 = vcmp.eq.s32.totalorder %v745, %v751
      %vm759 = vcmp.lt.s32.totalorder %v746, %v755
      %vm760 = vmand %vm758, %vm759
      %vm761 = vmor %vm757, %vm760
      %v762 = vlaneseq
      %v763 = vshrl.u32 %v762, 7
      %v764 = vand.u32 %v763, 4
      %vm765 = vcmp.ne.s32.totalorder %v764, 0
      %vm766 = vmxor %vm761, %vm765
      %v767 = vsel %vm766, %v745, %v751
      %v768 = vsel %vm766, %v746, %v755
      %769 = xla_tuple %v767, %v768
      %v771 = vunpack.c.l.s4 1417023538
      %v772 = vunpack.c.0.s8 %v771
      %v773 = vperm.slane %v767, %v772
      %v775 = vunpack.c.l.s4 1417023538
      %v776 = vunpack.c.0.s8 %v775
      %v777 = vperm.slane %v768, %v776
      %778 = xla_tuple %v773, %v777
      %vm779 = vcmp.gt.s32.totalorder %v767, %v773
      %vm780 = vcmp.eq.s32.totalorder %v767, %v773
      %vm781 = vcmp.lt.s32.totalorder %v768, %v777
      %vm782 = vmand %vm780, %vm781
      %vm783 = vmor %vm779, %vm782
      %v784 = vlaneseq
      %v785 = vshrl.u32 %v784, 7
      %v786 = vand.u32 %v785, 2
      %vm787 = vcmp.ne.s32.totalorder %v786, 0
      %vm788 = vmxor %vm783, %vm787
      %v789 = vsel %vm788, %v767, %v773
      %v790 = vsel %vm788, %v768, %v777
      %791 = xla_tuple %v789, %v790
      %v793 = vunpack.c.l.s4 1732584193
      %v794 = vunpack.c.0.s8 %v793
      %v795 = vperm.slane %v789, %v794
      %v797 = vunpack.c.l.s4 1732584193
      %v798 = vunpack.c.0.s8 %v797
      %v799 = vperm.slane %v790, %v798
      %800 = xla_tuple %v795, %v799
      %vm801 = vcmp.gt.s32.totalorder %v789, %v795
      %vm802 = vcmp.eq.s32.totalorder %v789, %v795
      %vm803 = vcmp.lt.s32.totalorder %v790, %v799
      %vm804 = vmand %vm802, %vm803
      %vm805 = vmor %vm801, %vm804
      %v806 = vlaneseq
      %v807 = vshrl.u32 %v806, 7
      %v808 = vand.u32 %v807, 1
      %vm809 = vcmp.ne.s32.totalorder %v808, 0
      %vm810 = vmxor %vm805, %vm809
      %v811 = vsel %vm810, %v789, %v795
      %v812 = vsel %vm810, %v790, %v799
      %813 = xla_tuple %v811, %v812
      %814 = vst [vmem:[#allocation12] sm:$0xff] %v811
      %815 = vst [vmem:[#allocation14] sm:$0xff] %v812
      %816 = xla_tuple %814, %815
    %v817 = vld [vmem:[#allocation11] sm:$0xff]
    %vm818 = vcmp.lt.s32.totalorder %v817, 0
    %v819 = vsub.s32 2147483647, %v817
    %v820 = vsel %vm818, %v819, %v817
    %821 = vst [vmem:[#allocation11] sm:$0xff] %v820
    %v822 = vld [vmem:[#allocation11] sm:$0xff]
    %823 = vxpose.xlu0.b32.start.end [1/1] (short) %v822, 128
    %v824 = vpop.trf.xlu0
    %v825 = vpop.trf.xlu0
    %v826 = vpop.trf.xlu0
    %v827 = vpop.trf.xlu0
    %v828 = vpop.trf.xlu0
    %v829 = vpop.trf.xlu0
    %v830 = vpop.trf.xlu0
    %v831 = vpop.trf.xlu0
    %v832 = vpop.trf.xlu0
    %v833 = vpop.trf.xlu0
    %v834 = vpop.trf.xlu0
    %v835 = vpop.trf.xlu0
    %v836 = vpop.trf.xlu0
    %v837 = vpop.trf.xlu0
    %v838 = vpop.trf.xlu0
    %v839 = vpop.trf.xlu0
    %840 = vst [vmem:[#allocation7] sm:$0xff] %v824
    %v841 = vld [vmem:[#allocation13] sm:$0xff]
    %842 = vxpose.xlu0.b32.start.end [1/1] (short) %v841, 128
    %v843 = vpop.trf.xlu0
    %v844 = vpop.trf.xlu0
    %v845 = vpop.trf.xlu0
    %v846 = vpop.trf.xlu0
    %v847 = vpop.trf.xlu0
    %v848 = vpop.trf.xlu0
    %v849 = vpop.trf.xlu0
    %v850 = vpop.trf.xlu0
    %v851 = vpop.trf.xlu0
    %v852 = vpop.trf.xlu0
    %v853 = vpop.trf.xlu0
    %v854 = vpop.trf.xlu0
    %v855 = vpop.trf.xlu0
    %v856 = vpop.trf.xlu0
    %v857 = vpop.trf.xlu0
    %v858 = vpop.trf.xlu0
    %859 = vst [vmem:[#allocation9] sm:$0xff] %v843
    %s861 = ssub.s32 4, 1
    %v862 = vld [vmem:[#allocation7] sm:%s861]
    %s864 = ssub.s32 4, 1
    %865 = vst [vmem:[#allocation8] sm:%s864] %v862
    %s867 = ssub.s32 4, 1
    %v868 = vld [vmem:[#allocation9] sm:%s867]
    %s870 = ssub.s32 4, 1
    %871 = vst [vmem:[#allocation10] sm:%s870] %v868
    // Predicated region
    $region37: #{custom-call} parent=1 // pred_check
      _
    $region38: #{custom-call} parent=1 // pred_check_branch
      %873 = sbr.rel (0) target = $region40
    $region39: #{custom-call} parent=1 // pred_region
      // Predicated region
      $region41: #{custom-call} parent=39 // pred_check
        _
      $region42: #{custom-call} parent=39 // pred_check_branch
        %875 = sbr.rel target = $region44
      $region43: #{custom-call} parent=39 // pred_region
        // Predicated region
        $region56: #{custom-call} parent=43 // pred_check
          _
        $region57: #{custom-call} parent=43 // pred_check_branch
          %891 = sbr.rel (0) target = $region59
        $region58: #{custom-call} parent=43 // pred_region
          %s893 = ssub.s32 4, 1
          loop: start=0, step=1, limit=1
          $region60: #{custom-call} parent=58 // loop_pre_header
            _
          $region61: #{custom-call} parent=58 // loop_header
            %s895 = sphi 0, %s899
            %p896 = scmp.ge.s32.totalorder %s895, 1
            %s900 = sphi [#allocation8], [#allocation8]
            %s901 = sphi %s1, %s1
          $region62: #{custom-call} parent=58 // loop_header_branch
            %898 = sbr.rel (%p896) target = $region66
          $region63: #{custom-call} parent=58 // loop_body
            %v902 = vld [vmem:[%s900] sm:%s893]
            %903 = vst [vmem:[%s901] sm:%s893] %v902
          $region64: #{custom-call} parent=58 // loop_footer
            %s899 = sadd.s32 1, %s895
          $region65: #{custom-call} parent=58 // loop_footer_branch
            %894 = sbr.rel target = $region61
          $region66: #{custom-call} parent=58 // loop_exit
            _
        $region59: #{custom-call} parent=43 // pred_fallthru
          _
      $region44: #{custom-call} parent=39 // pred_fallthru
        _
      // Predicated region
      $region45: #{custom-call} parent=39 // pred_check
        _
      $region46: #{custom-call} parent=39 // pred_check_branch
        %877 = sbr.rel (0) target = $region48
      $region47: #{custom-call} parent=39 // pred_region
        %s879 = ssub.s32 4, 1
        loop: start=0, step=1, limit=1
        $region49: #{custom-call} parent=47 // loop_pre_header
          _
        $region50: #{custom-call} parent=47 // loop_header
          %s881 = sphi 0, %s885
          %p882 = scmp.ge.s32.totalorder %s881, 1
          %s886 = sphi [#allocation8], [#allocation8]
          %s887 = sphi %s1, %s1
        $region51: #{custom-call} parent=47 // loop_header_branch
          %884 = sbr.rel (%p882) target = $region55
        $region52: #{custom-call} parent=47 // loop_body
          %v888 = vld [vmem:[%s886] sm:%s879]
          %889 = vst [vmem:[%s887] sm:%s879] %v888
        $region53: #{custom-call} parent=47 // loop_footer
          %s885 = sadd.s32 1, %s881
        $region54: #{custom-call} parent=47 // loop_footer_branch
          %880 = sbr.rel target = $region50
        $region55: #{custom-call} parent=47 // loop_exit
          _
      $region48: #{custom-call} parent=39 // pred_fallthru
        _
    $region40: #{custom-call} parent=1 // pred_fallthru
      _
    %904 = vnop
    // Predicated region
    $region67: #{custom-call} parent=1 // pred_check
      _
    $region68: #{custom-call} parent=1 // pred_check_branch
      %906 = sbr.rel (0) target = $region70
    $region69: #{custom-call} parent=1 // pred_region
      // Predicated region
      $region71: #{custom-call} parent=69 // pred_check
        _
      $region72: #{custom-call} parent=69 // pred_check_branch
        %908 = sbr.rel target = $region74
      $region73: #{custom-call} parent=69 // pred_region
        // Predicated region
        $region86: #{custom-call} parent=73 // pred_check
          _
        $region87: #{custom-call} parent=73 // pred_check_branch
          %924 = sbr.rel (0) target = $region89
        $region88: #{custom-call} parent=73 // pred_region
          %s926 = ssub.s32 4, 1
          loop: start=0, step=1, limit=1
          $region90: #{custom-call} parent=88 // loop_pre_header
            _
          $region91: #{custom-call} parent=88 // loop_header
            %s928 = sphi 0, %s932
            %p929 = scmp.ge.s32.totalorder %s928, 1
            %s933 = sphi [#allocation10], [#allocation10]
            %s934 = sphi %s2, %s2
          $region92: #{custom-call} parent=88 // loop_header_branch
            %931 = sbr.rel (%p929) target = $region96
          $region93: #{custom-call} parent=88 // loop_body
            %v935 = vld [vmem:[%s933] sm:%s926]
            %936 = vst [vmem:[%s934] sm:%s926] %v935
          $region94: #{custom-call} parent=88 // loop_footer
            %s932 = sadd.s32 1, %s928
          $region95: #{custom-call} parent=88 // loop_footer_branch
            %927 = sbr.rel target = $region91
          $region96: #{custom-call} parent=88 // loop_exit
            _
        $region89: #{custom-call} parent=73 // pred_fallthru
          _
      $region74: #{custom-call} parent=69 // pred_fallthru
        _
      // Predicated region
      $region75: #{custom-call} parent=69 // pred_check
        _
      $region76: #{custom-call} parent=69 // pred_check_branch
        %910 = sbr.rel (0) target = $region78
      $region77: #{custom-call} parent=69 // pred_region
        %s912 = ssub.s32 4, 1
        loop: start=0, step=1, limit=1
        $region79: #{custom-call} parent=77 // loop_pre_header
          _
        $region80: #{custom-call} parent=77 // loop_header
          %s914 = sphi 0, %s918
          %p915 = scmp.ge.s32.totalorder %s914, 1
          %s919 = sphi [#allocation10], [#allocation10]
          %s920 = sphi %s2, %s2
        $region81: #{custom-call} parent=77 // loop_header_branch
          %917 = sbr.rel (%p915) target = $region85
        $region82: #{custom-call} parent=77 // loop_body
          %v921 = vld [vmem:[%s919] sm:%s912]
          %922 = vst [vmem:[%s920] sm:%s912] %v921
        $region83: #{custom-call} parent=77 // loop_footer
          %s918 = sadd.s32 1, %s914
        $region84: #{custom-call} parent=77 // loop_footer_branch
          %913 = sbr.rel target = $region80
        $region85: #{custom-call} parent=77 // loop_exit
          _
      $region78: #{custom-call} parent=69 // pred_fallthru
        _
    $region70: #{custom-call} parent=1 // pred_fallthru
      _
    %937 = vnop

// kernel: ne.12
$region0: #{ne.12}
  #allocation2 [shape = 's32[1]{0}', space=sflag, size = 0x4, scoped, tag = 'scoped memory for ne.12']
  %s0 = inlined_call_operand.<no memory space> [shape: s32[], index: 0, kind: input, shape index: {}]
  %s1 = inlined_call_operand.hbm [shape: s32[2,8], index: 1, kind: output, shape index: {}]
  %v2 = vstv %s0
  $region1: #{ne.12} parent=0
    #allocation0 [shape = 'u8[1024]{0}', space=vmem, size = 0x400, scoped, tag = 'operand span for operand 1']
    #allocation1 [shape = 's32[1]{0}', space=sflag, size = 0x4, scoped, tag = 'scoped memory for ne.12']
    %3 = vsyncpa [#allocation1], 0
    %4 = vst [vmem:[#allocation0] sm:$0x3] %v2
    %6 = vsyncadd [#allocation1], 0
    %s8 = sshll.u32 [#allocation0], 4
    %s9 = int_to_ptr.vmem [resolvable:$true] %s8
    %s10 = sshll.u32 %s1, 4
    %s11 = int_to_ptr.hbm [resolvable:$true] %s10
    %13 = dma.vmem_to_hbm [thread:$0]  %s9, 32, %s11, [#allocation1]
    %15 = dma.done [#allocation1], 32
    %16 = vsyncpa [#allocation1], 1

// kernel: post_process.1
$region0: #{post_process.1}
  #allocation0 [shape = 'u32[]', space=smem, size = 0x4, offset = 0x4, fixed_abs, tag = 'smem constant byte address 0x4 - core index']
  #allocation1 [shape = 'u32[72,128]{1,0:T(1,128)}', space=vmem, size = 0x9000, scoped, tag = 'internal scratch']
  %s0 = inlined_call_operand.vmem [shape: bf16[2,4,16,128], index: 0, kind: input, shape index: {}]
  %s1 = inlined_call_operand.hbm [shape: bf16[2,4,16,128], index: 1, kind: output, shape index: {0}]
  %s2 = inlined_call_operand.vmem [shape: f32[2,4,16,128], index: 2, kind: output, shape index: {1}]
  %3 = xla_tuple %s1, %s2
  %s4 = sld [smem:[#allocation0]]
  $region45: #{post_process.1} parent=0
    _
  %s6 = ssub.s32 1, %s4
  %s7 = scalar_select 0, %s6, %s4
  $region1: #{post_process.1} parent=0
    #allocation2 [shape = 'u8[32768]{0}', space=vmem, size = 0x8000, scoped, tag = 'output window, operand 0']
    #allocation3 [shape = 's32[2]{0}', space=sflag, size = 0x8, scoped, tag = 'scoped memory for post_process.1']
    %8 = vsyncpa [#allocation3], 0
    %s9 = scalar_lea.sflag [#allocation3], 1
    %10 = vsyncpa %s9, 0
    loop: start=0, step=1, limit=4
    $region2: #{post_process.1} parent=1 // loop_pre_header
      _
    $region3: #{post_process.1} parent=1 // loop_header
      %s12 = sphi 0, %s16
      %p13 = scmp.ge.s32.totalorder %s12, 4
      %s19 = sphi 0, %s31
      %s20 = sphi 0, %s27
      %s21 = sphi 0, %s19
      %s22 = sphi 0, %s20
      %s23 = sphi 0, %s21
      %s24 = sphi 0, %s22
      %s36 = sphi 0, %s38
      %s39 = sphi 0, %s36
      %s40 = sphi 0, %s39
      %s56 = sphi 0, %s40
      %s64 = sphi 0, %s66
      %s67 = sphi 0, %s64
      %s68 = sphi 0, %s67
      %s84 = sphi 0, %s68
      %s92 = sphi 0, %s94
      %s95 = sphi 0, %s92
      %s96 = sphi 0, %s95
      %s112 = sphi 0, %s96
    $region4: #{post_process.1} parent=1 // loop_header_branch
      %15 = sbr.rel (%p13) target = $region8
    $region5: #{post_process.1} parent=1 // loop_body
      %s17 = ssub.s32 %s12, 1
      %s18 = ssub.s32 %s12, 2
      %s25 = sadd.s32 1, %s20
      %p26 = scmp.ge.s32.totalorder %s25, 1
      %s27 = scalar_select %p26, 0, %s25
      %s28 = sadd.s32 1, %s19
      %s29 = scalar_select %p26, %s28, %s19
      %p30 = scmp.ge.s32.totalorder %s29, 2
      %s31 = scalar_select %p30, 0, %s29
      %s32 = ssub.s32 %s19, %s31
      %s33 = ssub.s32 %s20, %s27
      %s34 = sor.u32 %s32, %s33
      %p35 = scmp.eq.s32.totalorder %s34, 0
      %s37 = sadd.s32 %s36, 1
      %s38 = scalar_select %p35, %s36, %s37
      %p41 = pneg %p35
      %p42 = scmp.eq.s32.totalorder %s12, 1
      %p43 = por %p41, %p42
      %p44 = scmp.ne.s32.totalorder %s36, %s39
      %p45 = scmp.eq.s32.totalorder %s12, 0
      %p46 = por %p44, %p45
      %p47 = scmp.ne.s32.totalorder %s36, %s39
      %p48 = scmp.eq.s32.totalorder %s17, 1
      %p49 = por %p47, %p48
      %p50 = scmp.ne.s32.totalorder %s39, %s40
      %p51 = scmp.eq.s32.totalorder %s17, 0
      %p52 = por %p50, %p51
      %p53 = scmp.ne.s32.totalorder %s39, %s40
      %p54 = scmp.eq.s32.totalorder %s18, 1
      %p55 = por %p53, %p54
      %p57 = scmp.ne.s32.totalorder %s40, %s56
      %p58 = scmp.eq.s32.totalorder %s18, 0
      %p59 = por %p57, %p58
      %s60 = ssub.s32 %s19, %s31
      %s61 = ssub.s32 %s20, %s27
      %s62 = sor.u32 %s60, %s61
      %p63 = scmp.eq.s32.totalorder %s62, 0
      %s65 = sadd.s32 %s64, 1
      %s66 = scalar_select %p63, %s64, %s65
      %p69 = pneg %p63
      %p70 = scmp.eq.s32.totalorder %s12, 1
      %p71 = por %p69, %p70
      %p72 = scmp.ne.s32.totalorder %s64, %s67
      %p73 = scmp.eq.s32.totalorder %s12, 0
      %p74 = por %p72, %p73
      %p75 = scmp.ne.s32.totalorder %s64, %s67
      %p76 = scmp.eq.s32.totalorder %s17, 1
      %p77 = por %p75, %p76
      %p78 = scmp.ne.s32.totalorder %s67, %s68
      %p79 = scmp.eq.s32.totalorder %s17, 0
      %p80 = por %p78, %p79
      %p81 = scmp.ne.s32.totalorder %s67, %s68
      %p82 = scmp.eq.s32.totalorder %s18, 1
      %p83 = por %p81, %p82
      %p85 = scmp.ne.s32.totalorder %s68, %s84
      %p86 = scmp.eq.s32.totalorder %s18, 0
      %p87 = por %p85, %p86
      %s88 = ssub.s32 %s19, %s31
      %s89 = ssub.s32 %s20, %s27
      %s90 = sor.u32 %s88, %s89
      %p91 = scmp.eq.s32.totalorder %s90, 0
      %s93 = sadd.s32 %s92, 1
      %s94 = scalar_select %p91, %s92, %s93
      %p97 = pneg %p91
      %p98 = scmp.eq.s32.totalorder %s12, 1
      %p99 = por %p97, %p98
      %p100 = scmp.ne.s32.totalorder %s92, %s95
      %p101 = scmp.eq.s32.totalorder %s12, 0
      %p102 = por %p100, %p101
      %p103 = scmp.ne.s32.totalorder %s92, %s95
      %p104 = scmp.eq.s32.totalorder %s17, 1
      %p105 = por %p103, %p104
      %p106 = scmp.ne.s32.totalorder %s95, %s96
      %p107 = scmp.eq.s32.totalorder %s17, 0
      %p108 = por %p106, %p107
      %p109 = scmp.ne.s32.totalorder %s95, %s96
      %p110 = scmp.eq.s32.totalorder %s18, 1
      %p111 = por %p109, %p110
      %p113 = scmp.ne.s32.totalorder %s96, %s112
      %p114 = scmp.eq.s32.totalorder %s18, 0
      %p115 = por %p113, %p114
      %p116 = scmp.le.s32.totalorder 1, %s12
      %p117 = scmp.lt.s32.totalorder %s12, 3
      %p118 = pnand %p116, %p117
      %p119 = pneg %p118
      // Predicated region
      $region9: #{post_process.1} parent=5 // pred_check
        _
      $region10: #{post_process.1} parent=5 // pred_check_branch
        %121 = sbr.rel (%p118) target = $region12
      $region11: #{post_process.1} parent=5 // pred_region
        %s122 = ssub.s32 %s12, 1
      $region12: #{post_process.1} parent=5 // pred_fallthru
        _
      %p123 = scmp.lt.s32.totalorder %s12, 2
      // Predicated region
      $region13: #{post_process.1} parent=5 // pred_check
        %p124 = pneg %p123
      $region14: #{post_process.1} parent=5 // pred_check_branch
        %126 = sbr.rel (%p124) target = $region16
      $region15: #{post_process.1} parent=5 // pred_region
        // Predicated region
        $region17: #{post_process.1} parent=15 // pred_check
          %p127 = pneg %p46
        $region18: #{post_process.1} parent=15 // pred_check_branch
          %129 = sbr.rel (%p127) target = $region20
        $region19: #{post_process.1} parent=15 // pred_region
          %s130 = smul.u32 4, %s20
          %p131 = scmp.lt.s32.totalorder %s19, 1
          %s132 = scalar_select %p131, %s19, 1
          %p133 = scmp.lt.s32.totalorder %s130, 3
          %s134 = scalar_select %p133, %s130, 3
          %s135 = smul.addr %s134, 2
          %s136 = smul.addr %s132, 8
          %s137 = sadd.s32 %s135, %s136
          %s138 = smul.addr %s137, 4
          %s139 = scalar_lea.vmem %s0, %s138
          %s140 = smul.u32 4, %s20
        $region20: #{post_process.1} parent=15 // pred_fallthru
          _
      $region16: #{post_process.1} parent=5 // pred_fallthru
        _
      %p141 = scmp.le.s32.totalorder 1, %s12
      %p142 = scmp.lt.s32.totalorder %s12, 3
      %p143 = pnand %p141, %p142
      %p144 = pneg %p143
      // Predicated region
      $region21: #{post_process.1} parent=5 // pred_check
        _
      $region22: #{post_process.1} parent=5 // pred_check_branch
        %146 = sbr.rel (%p143) target = $region24
      $region23: #{post_process.1} parent=5 // pred_region
        %s147 = ssub.s32 %s12, 1
        %s148 = smul.u32 4, %s22
        %p149 = scmp.lt.s32.totalorder %s21, 1
        %s150 = scalar_select %p149, %s21, 1
        %p151 = scmp.lt.s32.totalorder %s148, 3
        %s152 = scalar_select %p151, %s148, 3
        %s153 = smul.addr %s152, 2
        %s154 = smul.addr %s150, 8
        %s155 = sadd.s32 %s153, %s154
        %s156 = smul.addr %s155, 4
        %s157 = scalar_lea.vmem %s0, %s156
        %p158 = pneg %p52
        %p159 = pneg %p49
        %p160 = pneg %p80
        %p161 = pneg %p77
        %s162 = sand.u32 %s67, 1
        %s163 = scalar_lea.sflag [#allocation3], %s162
        %s164 = sand.u32 %s67, 1
        %s165 = smul.addr %s164, 32
        %s166 = scalar_lea.vmem [#allocation2], %s165
        %p167 = pneg %p108
        %p168 = pneg %p105
        %s169 = smul.u32 4, %s22
        %p170 = scmp.lt.s32.totalorder %s21, 1
        %s171 = scalar_select %p170, %s21, 1
        %p172 = scmp.lt.s32.totalorder %s169, 3
        %s173 = scalar_select %p172, %s169, 3
        %s174 = smul.addr %s173, 2
        %s175 = smul.addr %s171, 8
        %s176 = sadd.s32 %s174, %s175
        %s177 = smul.addr %s176, 8
        %s178 = scalar_lea.vmem %s2, %s177
        %s179 = smul.u32 4, %s22
        %p180 = scmp.lt.s32.totalorder %s21, 1
        %s181 = scalar_select %p180, %s21, 1
        %p182 = scmp.lt.s32.totalorder %s179, 3
        %s183 = scalar_select %p182, %s179, 3
        %s184 = smul.addr %s183, 2
        %s185 = smul.addr %s181, 8
        %s186 = sadd.s32 %s184, %s185
        %s187 = smul.addr %s186, 4
        %s188 = scalar_lea.vmem %s0, %s187
        %s189 = smul.u32 4, %s22
        %s190 = smul.u32 4, %s22
        %s191 = smul.u32 4, %s22
        %p192 = scmp.lt.s32.totalorder %s21, 1
        %s193 = scalar_select %p192, %s21, 1
        %p194 = scmp.lt.s32.totalorder %s191, 3
        %s195 = scalar_select %p194, %s191, 3
        %s196 = smul.addr %s195, 2
        %s197 = smul.addr %s193, 8
        %s198 = sadd.s32 %s196, %s197
        %s199 = smul.addr %s198, 8
        %s200 = scalar_lea.vmem %s2, %s199
        %s201 = smul.u32 4, %s22
        %v202 = vlaneseq
        %v203 = vshrl.u32 %v202, 7
        %v204 = vadd.s32 %v203, 8
        %v205 = vlaneseq
        %v206 = vand.u32 %v205, 127
        %vm207 = vcmp.eq.s32.totalorder %v203, 0
        %vm208 = vcmp.eq.s32.totalorder %v204, 0
        %vm209 = vcmp.eq.s32.totalorder %v203, 15
        %vm210 = vcmp.eq.s32.totalorder %v204, 15
        %vm211 = vcmp.eq.s32.totalorder %v206, 0
        %vm212 = vcmp.eq.s32.totalorder %v206, 127
        %v213 = vld [vmem:[%s188] sm:$0xf]
        %v214 = vld [vmem:[%s188 + $0x4] sm:$0xf]
        %v215 = vunpack.c.l.bf16 %v213
        %v216 = vunpack.c.l.bf16 %v214
        %v217 = vxor.u32 %v215, 2147483648
        %v218 = vxor.u32 %v216, 2147483648
        %v219 = vmul.f32 %v217, 1.442695
        %v220 = vpow.pop %v219
        %v221 = vmul.f32 %v218, 1.442695
        %v222 = vpow.pop %v221
        %v223 = vadd.f32 %v220, 1.0
        %v224 = vadd.f32 %v222, 1.0
        %v225 = vrcp.pop %v223
        %v226 = vmul.f32 %v223, %v225
        %v227 = vsub.f32 1.0, %v226
        %v228 = vmul.f32 %v225, %v227
        %v229 = vadd.f32 %v225, %v228
        %vm230 = vweird.f32 %v223
        %vm231 = vweird.f32 %v225
        %vm232 = vmor %vm230, %vm231
        %v233 = vsel %vm232, %v225, %v229
        %v234 = vand.u32 2147483647, %v223
        %vm235 = vcmp.eq.f32.partialorder %v234, 8.507059e+37
        %v236 = vand.u32 %v223, 2147483648
        %v237 = vor.u32 1.1754944e-38, %v236
        %v238 = vsel %vm235, %v237, %v233
        %v239 = vmul.f32 1.0, %v238
        %v240 = vrcp.pop %v224
        %v241 = vmul.f32 %v224, %v240
        %v242 = vsub.f32 1.0, %v241
        %v243 = vmul.f32 %v240, %v242
        %v244 = vadd.f32 %v240, %v243
        %vm245 = vweird.f32 %v224
        %vm246 = vweird.f32 %v240
        %vm247 = vmor %vm245, %vm246
        %v248 = vsel %vm247, %v240, %v244
        %v249 = vand.u32 2147483647, %v224
        %vm250 = vcmp.eq.f32.partialorder %v249, 8.507059e+37
        %v251 = vand.u32 %v224, 2147483648
        %v252 = vor.u32 1.1754944e-38, %v251
        %v253 = vsel %vm250, %v252, %v248
        %v254 = vmul.f32 1.0, %v253
        %v255 = vmax.f32 %v239, 0.0001
        %v256 = vmax.f32 %v254, 0.0001
        %v257 = vmin.f32 %v255, 0.9999
        %v258 = vmin.f32 %v256, 0.9999
        %259 = vrot.lane.b32.xlu0 %v257, 1
        %v260 = vpop.permute.xlu0 %259
        %261 = vrot.lane.b32.xlu0 %v258, 1
        %v262 = vpop.permute.xlu0 %261
        %263 = vrot.lane.b32.xlu0 %v257, 127
        %v264 = vpop.permute.xlu0 %263
        %265 = vrot.lane.b32.xlu0 %v258, 127
        %v266 = vpop.permute.xlu0 %265
        %v267 = vsel %vm211, -1.0, %v260
        %v268 = vsel %vm211, -1.0, %v262
        %v269 = vsel %vm212, -1.0, %v264
        %v270 = vsel %vm212, -1.0, %v266
        %v271 = vmax.f32 %v267, %v269
        %v272 = vmax.f32 %v268, %v270
        %v273 = vmax.f32 %v257, %v271
        %v274 = vmax.f32 %v258, %v272
        %v275 = vrot.slane %v273, 7
        %v276 = vrot.slane %v274, 7
        %vm277 = vcmp.lt.s32.totalorder %v203, 1
        %v278 = vsel %vm277, %v275, %v276
        %v279 = vsel %vm277, %v276, %v275
        %v280 = vrot.slane %v273, 1
        %v281 = vrot.slane %v274, 1
        %vm282 = vcmp.lt.s32.totalorder %v203, 7
        %v283 = vsel %vm282, %v280, %v281
        %v284 = vsel %vm282, %v281, %v280
        %v285 = vsel %vm207, -1.0, %v279
        %v286 = vsel %vm208, -1.0, %v278
        %v287 = vsel %vm209, -1.0, %v283
        %v288 = vsel %vm210, -1.0, %v284
        %v289 = vmax.f32 %v285, %v287
        %v290 = vmax.f32 %v286, %v288
        %v291 = vmax.f32 %v273, %v289
        %v292 = vmax.f32 %v274, %v290
        %vm293 = vcmp.eq.f32.partialorder %v291, %v257
        %vm294 = vcmp.eq.f32.partialorder %v292, %v258
        %v295 = vpack.c.bf16 %v257, %v257
        %v296 = vpack.c.bf16 %v258, %v258
        %297 = vst [vmem:[%s166] sm:$0xf] %v295
        %298 = vst [vmem:[%s166 + $0x4] sm:$0xf] %v296
        %v299 = vsel %vm293, %v257, 0.0
        %v300 = vsel %vm294, %v258, 0.0
        %301 = vst [vmem:[%s200] sm:$0xff] %v299
        %302 = vst [vmem:[%s200 + $0x8] sm:$0xff] %v300
        %s303 = scalar_lea.vmem %s188, 8
        %v304 = vld [vmem:[%s303] sm:$0xf]
        %v305 = vld [vmem:[%s303 + $0x4] sm:$0xf]
        %v306 = vunpack.c.l.bf16 %v304
        %v307 = vunpack.c.l.bf16 %v305
        %v308 = vxor.u32 %v306, 2147483648
        %v309 = vxor.u32 %v307, 2147483648
        %v310 = vmul.f32 %v308, 1.442695
        %v311 = vpow.pop %v310
        %v312 = vmul.f32 %v309, 1.442695
        %v313 = vpow.pop %v312
        %v314 = vadd.f32 %v311, 1.0
        %v315 = vadd.f32 %v313, 1.0
        %v316 = vrcp.pop %v314
        %v317 = vmul.f32 %v314, %v316
        %v318 = vsub.f32 1.0, %v317
        %v319 = vmul.f32 %v316, %v318
        %v320 = vadd.f32 %v316, %v319
        %vm321 = vweird.f32 %v314
        %vm322 = vweird.f32 %v316
        %vm323 = vmor %vm321, %vm322
        %v324 = vsel %vm323, %v316, %v320
        %v325 = vand.u32 2147483647, %v314
        %vm326 = vcmp.eq.f32.partialorder %v325, 8.507059e+37
        %v327 = vand.u32 %v314, 2147483648
        %v328 = vor.u32 1.1754944e-38, %v327
        %v329 = vsel %vm326, %v328, %v324
        %v330 = vmul.f32 1.0, %v329
        %v331 = vrcp.pop %v315
        %v332 = vmul.f32 %v315, %v331
        %v333 = vsub.f32 1.0, %v332
        %v334 = vmul.f32 %v331, %v333
        %v335 = vadd.f32 %v331, %v334
        %vm336 = vweird.f32 %v315
        %vm337 = vweird.f32 %v331
        %vm338 = vmor %vm336, %vm337
        %v339 = vsel %vm338, %v331, %v335
        %v340 = vand.u32 2147483647, %v315
        %vm341 = vcmp.eq.f32.partialorder %v340, 8.507059e+37
        %v342 = vand.u32 %v315, 2147483648
        %v343 = vor.u32 1.1754944e-38, %v342
        %v344 = vsel %vm341, %v343, %v339
        %v345 = vmul.f32 1.0, %v344
        %v346 = vmax.f32 %v330, 0.0001
        %v347 = vmax.f32 %v345, 0.0001
        %v348 = vmin.f32 %v346, 0.9999
        %v349 = vmin.f32 %v347, 0.9999
        %350 = vrot.lane.b32.xlu0 %v348, 1
        %v351 = vpop.permute.xlu0 %350
        %352 = vrot.lane.b32.xlu0 %v349, 1
        %v353 = vpop.permute.xlu0 %352
        %354 = vrot.lane.b32.xlu0 %v348, 127
        %v355 = vpop.permute.xlu0 %354
        %356 = vrot.lane.b32.xlu0 %v349, 127
        %v357 = vpop.permute.xlu0 %356
        %v358 = vsel %vm211, -1.0, %v351
        %v359 = vsel %vm211, -1.0, %v353
        %v360 = vsel %vm212, -1.0, %v355
        %v361 = vsel %vm212, -1.0, %v357
        %v362 = vmax.f32 %v358, %v360
        %v363 = vmax.f32 %v359, %v361
        %v364 = vmax.f32 %v348, %v362
        %v365 = vmax.f32 %v349, %v363
        %v366 = vrot.slane %v364, 7
        %v367 = vrot.slane %v365, 7
        %v368 = vsel %vm277, %v366, %v367
        %v369 = vsel %vm277, %v367, %v366
        %v370 = vrot.slane %v364, 1
        %v371 = vrot.slane %v365, 1
        %v372 = vsel %vm282, %v370, %v371
        %v373 = vsel %vm282, %v371, %v370
        %v374 = vsel %vm207, -1.0, %v369
        %v375 = vsel %vm208, -1.0, %v368
        %v376 = vsel %vm209, -1.0, %v372
        %v377 = vsel %vm210, -1.0, %v373
        %v378 = vmax.f32 %v374, %v376
        %v379 = vmax.f32 %v375, %v377
        %v380 = vmax.f32 %v364, %v378
        %v381 = vmax.f32 %v365, %v379
        %vm382 = vcmp.eq.f32.partialorder %v380, %v348
        %vm383 = vcmp.eq.f32.partialorder %v381, %v349
        %v384 = vpack.c.bf16 %v348, %v348
        %v385 = vpack.c.bf16 %v349, %v349
        %s386 = scalar_lea.vmem %s166, 8 [#allocation2]
        %387 = vst [vmem:[%s386] sm:$0xf] %v384
        %388 = vst [vmem:[%s386 + $0x4] sm:$0xf] %v385
        %v389 = vsel %vm382, %v348, 0.0
        %v390 = vsel %vm383, %v349, 0.0
        %s391 = scalar_lea.vmem %s200, 16
        %392 = vst [vmem:[%s391] sm:$0xff] %v389
        %393 = vst [vmem:[%s391 + $0x8] sm:$0xff] %v390
        %s394 = scalar_lea.vmem %s188, 16
        %v395 = vld [vmem:[%s394] sm:$0xf]
        %v396 = vld [vmem:[%s394 + $0x4] sm:$0xf]
        %v397 = vunpack.c.l.bf16 %v395
        %v398 = vunpack.c.l.bf16 %v396
        %v399 = vxor.u32 %v397, 2147483648
        %v400 = vxor.u32 %v398, 2147483648
        %v401 = vmul.f32 %v399, 1.442695
        %v402 = vpow.pop %v401
        %v403 = vmul.f32 %v400, 1.442695
        %v404 = vpow.pop %v403
        %v405 = vadd.f32 %v402, 1.0
        %v406 = vadd.f32 %v404, 1.0
        %v407 = vrcp.pop %v405
        %v408 = vmul.f32 %v405, %v407
        %v409 = vsub.f32 1.0, %v408
        %v410 = vmul.f32 %v407, %v409
        %v411 = vadd.f32 %v407, %v410
        %vm412 = vweird.f32 %v405
        %vm413 = vweird.f32 %v407
        %vm414 = vmor %vm412, %vm413
        %v415 = vsel %vm414, %v407, %v411
        %v416 = vand.u32 2147483647, %v405
        %vm417 = vcmp.eq.f32.partialorder %v416, 8.507059e+37
        %v418 = vand.u32 %v405, 2147483648
        %v419 = vor.u32 1.1754944e-38, %v418
        %v420 = vsel %vm417, %v419, %v415
        %v421 = vmul.f32 1.0, %v420
        %v422 = vrcp.pop %v406
        %v423 = vmul.f32 %v406, %v422
        %v424 = vsub.f32 1.0, %v423
        %v425 = vmul.f32 %v422, %v424
        %v426 = vadd.f32 %v422, %v425
        %vm427 = vweird.f32 %v406
        %vm428 = vweird.f32 %v422
        %vm429 = vmor %vm427, %vm428
        %v430 = vsel %vm429, %v422, %v426
        %v431 = vand.u32 2147483647, %v406
        %vm432 = vcmp.eq.f32.partialorder %v431, 8.507059e+37
        %v433 = vand.u32 %v406, 2147483648
        %v434 = vor.u32 1.1754944e-38, %v433
        %v435 = vsel %vm432, %v434, %v430
        %v436 = vmul.f32 1.0, %v435
        %v437 = vmax.f32 %v421, 0.0001
        %v438 = vmax.f32 %v436, 0.0001
        %v439 = vmin.f32 %v437, 0.9999
        %v440 = vmin.f32 %v438, 0.9999
        %441 = vrot.lane.b32.xlu0 %v439, 1
        %v442 = vpop.permute.xlu0 %441
        %443 = vrot.lane.b32.xlu0 %v440, 1
        %v444 = vpop.permute.xlu0 %443
        %445 = vrot.lane.b32.xlu0 %v439, 127
        %v446 = vpop.permute.xlu0 %445
        %447 = vrot.lane.b32.xlu0 %v440, 127
        %v448 = vpop.permute.xlu0 %447
        %v449 = vsel %vm211, -1.0, %v442
        %v450 = vsel %vm211, -1.0, %v444
        %v451 = vsel %vm212, -1.0, %v446
        %v452 = vsel %vm212, -1.0, %v448
        %v453 = vmax.f32 %v449, %v451
        %v454 = vmax.f32 %v450, %v452
        %v455 = vmax.f32 %v439, %v453
        %v456 = vmax.f32 %v440, %v454
        %v457 = vrot.slane %v455, 7
        %v458 = vrot.slane %v456, 7
        %v459 = vsel %vm277, %v457, %v458
        %v460 = vsel %vm277, %v458, %v457
        %v461 = vrot.slane %v455, 1
        %v462 = vrot.slane %v456, 1
        %v463 = vsel %vm282, %v461, %v462
        %v464 = vsel %vm282, %v462, %v461
        %v465 = vsel %vm207, -1.0, %v460
        %v466 = vsel %vm208, -1.0, %v459
        %v467 = vsel %vm209, -1.0, %v463
        %v468 = vsel %vm210, -1.0, %v464
        %v469 = vmax.f32 %v465, %v467
        %v470 = vmax.f32 %v466, %v468
        %v471 = vmax.f32 %v455, %v469
        %v472 = vmax.f32 %v456, %v470
        %vm473 = vcmp.eq.f32.partialorder %v471, %v439
        %vm474 = vcmp.eq.f32.partialorder %v472, %v440
        %v475 = vpack.c.bf16 %v439, %v439
        %v476 = vpack.c.bf16 %v440, %v440
        %s477 = scalar_lea.vmem %s166, 16 [#allocation2]
        %478 = vst [vmem:[%s477] sm:$0xf] %v475
        %479 = vst [vmem:[%s477 + $0x4] sm:$0xf] %v476
        %v480 = vsel %vm473, %v439, 0.0
        %v481 = vsel %vm474, %v440, 0.0
        %s482 = scalar_lea.vmem %s200, 32
        %483 = vst [vmem:[%s482] sm:$0xff] %v480
        %484 = vst [vmem:[%s482 + $0x8] sm:$0xff] %v481
        %s485 = scalar_lea.vmem %s188, 24
        %v486 = vld [vmem:[%s485] sm:$0xf]
        %v487 = vld [vmem:[%s485 + $0x4] sm:$0xf]
        %v488 = vunpack.c.l.bf16 %v486
        %v489 = vunpack.c.l.bf16 %v487
        %v490 = vxor.u32 %v488, 2147483648
        %v491 = vxor.u32 %v489, 2147483648
        %v492 = vmul.f32 %v490, 1.442695
        %v493 = vpow.pop %v492
        %v494 = vmul.f32 %v491, 1.442695
        %v495 = vpow.pop %v494
        %v496 = vadd.f32 %v493, 1.0
        %v497 = vadd.f32 %v495, 1.0
        %v498 = vrcp.pop %v496
        %v499 = vmul.f32 %v496, %v498
        %v500 = vsub.f32 1.0, %v499
        %v501 = vmul.f32 %v498, %v500
        %v502 = vadd.f32 %v498, %v501
        %vm503 = vweird.f32 %v496
        %vm504 = vweird.f32 %v498
        %vm505 = vmor %vm503, %vm504
        %v506 = vsel %vm505, %v498, %v502
        %v507 = vand.u32 2147483647, %v496
        %vm508 = vcmp.eq.f32.partialorder %v507, 8.507059e+37
        %v509 = vand.u32 %v496, 2147483648
        %v510 = vor.u32 1.1754944e-38, %v509
        %v511 = vsel %vm508, %v510, %v506
        %v512 = vmul.f32 1.0, %v511
        %v513 = vrcp.pop %v497
        %v514 = vmul.f32 %v497, %v513
        %v515 = vsub.f32 1.0, %v514
        %v516 = vmul.f32 %v513, %v515
        %v517 = vadd.f32 %v513, %v516
        %vm518 = vweird.f32 %v497
        %vm519 = vweird.f32 %v513
        %vm520 = vmor %vm518, %vm519
        %v521 = vsel %vm520, %v513, %v517
        %v522 = vand.u32 2147483647, %v497
        %vm523 = vcmp.eq.f32.partialorder %v522, 8.507059e+37
        %v524 = vand.u32 %v497, 2147483648
        %v525 = vor.u32 1.1754944e-38, %v524
        %v526 = vsel %vm523, %v525, %v521
        %v527 = vmul.f32 1.0, %v526
        %v528 = vmax.f32 %v512, 0.0001
        %v529 = vmax.f32 %v527, 0.0001
        %v530 = vmin.f32 %v528, 0.9999
        %v531 = vmin.f32 %v529, 0.9999
        %532 = vrot.lane.b32.xlu0 %v530, 1
        %v533 = vpop.permute.xlu0 %532
        %534 = vrot.lane.b32.xlu0 %v531, 1
        %v535 = vpop.permute.xlu0 %534
        %536 = vrot.lane.b32.xlu0 %v530, 127
        %v537 = vpop.permute.xlu0 %536
        %538 = vrot.lane.b32.xlu0 %v531, 127
        %v539 = vpop.permute.xlu0 %538
        %v540 = vsel %vm211, -1.0, %v533
        %v541 = vsel %vm211, -1.0, %v535
        %v542 = vsel %vm212, -1.0, %v537
        %v543 = vsel %vm212, -1.0, %v539
        %v544 = vmax.f32 %v540, %v542
        %v545 = vmax.f32 %v541, %v543
        %v546 = vmax.f32 %v530, %v544
        %v547 = vmax.f32 %v531, %v545
        %v548 = vrot.slane %v546, 7
        %v549 = vrot.slane %v547, 7
        %v550 = vsel %vm277, %v548, %v549
        %v551 = vsel %vm277, %v549, %v548
        %v552 = vrot.slane %v546, 1
        %v553 = vrot.slane %v547, 1
        %v554 = vsel %vm282, %v552, %v553
        %v555 = vsel %vm282, %v553, %v552
        %v556 = vsel %vm207, -1.0, %v551
        %v557 = vsel %vm208, -1.0, %v550
        %v558 = vsel %vm209, -1.0, %v554
        %v559 = vsel %vm210, -1.0, %v555
        %v560 = vmax.f32 %v556, %v558
        %v561 = vmax.f32 %v557, %v559
        %v562 = vmax.f32 %v546, %v560
        %v563 = vmax.f32 %v547, %v561
        %vm564 = vcmp.eq.f32.partialorder %v562, %v530
        %vm565 = vcmp.eq.f32.partialorder %v563, %v531
        %v566 = vpack.c.bf16 %v530, %v530
        %v567 = vpack.c.bf16 %v531, %v531
        %s568 = scalar_lea.vmem %s166, 24 [#allocation2]
        %569 = vst [vmem:[%s568] sm:$0xf] %v566
        %570 = vst [vmem:[%s568 + $0x4] sm:$0xf] %v567
        %v571 = vsel %vm564, %v530, 0.0
        %v572 = vsel %vm565, %v531, 0.0
        %s573 = scalar_lea.vmem %s200, 48
        %574 = vst [vmem:[%s573] sm:$0xff] %v571
        %575 = vst [vmem:[%s573 + $0x8] sm:$0xff] %v572
        %s576 = sand.u32 %s67, 1
        %s577 = scalar_lea.sflag [#allocation3], %s576
        %s578 = sand.u32 %s67, 1
        %s579 = smul.addr %s578, 32
        %s580 = scalar_lea.vmem [#allocation2], %s579
        %s581 = smul.u32 4, %s22
        %p582 = scmp.lt.s32.totalorder %s21, 1
        %s583 = scalar_select %p582, %s21, 1
        %p584 = scmp.lt.s32.totalorder %s581, 3
        %s585 = scalar_select %p584, %s581, 3
        %s586 = smul.addr %s585, 2
        %s587 = smul.addr %s583, 8
        %s588 = sadd.s32 %s586, %s587
        %s589 = smul.addr %s588, 8
        %s590 = scalar_lea.vmem %s2, %s589
        // Predicated region
        $region25: #{post_process.1} parent=23 // pred_check
          %p591 = pneg %p77
        $region26: #{post_process.1} parent=23 // pred_check_branch
          %593 = sbr.rel (%p591) target = $region28
        $region27: #{post_process.1} parent=23 // pred_region
          %s594 = smul.u32 4, %s22
          %596 = vsyncadd %s577, 0
          %s597 = smul.addr %s594, 2
          %s598 = smul.addr %s21, 8
          %s599 = sadd.s32 %s597, %s598
          %s600 = smul.addr %s599, 4
          %s601 = scalar_lea.hbm %s1, %s600
          %s602 = sshll.u32 %s580, 4
          %s603 = int_to_ptr.vmem [resolvable:$true] %s602
          %s604 = sshll.u32 %s601, 4
          %s605 = int_to_ptr.hbm [resolvable:$true] %s604
          %610 = dma.vmem_to_hbm [thread:$0]  %s603, 512, %s605, %s577, 64, 64, 4
        $region28: #{post_process.1} parent=23 // pred_fallthru
          _
        // Predicated region
        $region29: #{post_process.1} parent=23 // pred_check
          %p611 = pneg %p105
        $region30: #{post_process.1} parent=23 // pred_check_branch
          %613 = sbr.rel (%p611) target = $region32
        $region31: #{post_process.1} parent=23 // pred_region
          %s614 = smul.u32 4, %s22
        $region32: #{post_process.1} parent=23 // pred_fallthru
          _
      $region24: #{post_process.1} parent=5 // pred_fallthru
        _
      %p615 = scmp.le.s32.totalorder 2, %s12
      // Predicated region
      $region33: #{post_process.1} parent=5 // pred_check
        %p616 = pneg %p615
      $region34: #{post_process.1} parent=5 // pred_check_branch
        %618 = sbr.rel (%p616) target = $region36
      $region35: #{post_process.1} parent=5 // pred_region
        %s619 = ssub.s32 %s12, 2
        // Predicated region
        $region37: #{post_process.1} parent=35 // pred_check
          %p620 = pneg %p83
        $region38: #{post_process.1} parent=35 // pred_check_branch
          %622 = sbr.rel (%p620) target = $region40
        $region39: #{post_process.1} parent=35 // pred_region
          %s623 = sand.u32 %s68, 1
          %s624 = scalar_lea.sflag [#allocation3], %s623
          %s625 = sand.u32 %s68, 1
          %s626 = smul.addr %s625, 32
          %s627 = scalar_lea.vmem [#allocation2], %s626
          %629 = dma.done %s624, 512
        $region40: #{post_process.1} parent=35 // pred_fallthru
          _
        // Predicated region
        $region41: #{post_process.1} parent=35 // pred_check
          %p630 = pneg %p111
        $region42: #{post_process.1} parent=35 // pred_check_branch
          %632 = sbr.rel (%p630) target = $region44
        $region43: #{post_process.1} parent=35 // pred_region
          %s633 = smul.u32 4, %s24
          %p634 = scmp.lt.s32.totalorder %s23, 1
          %s635 = scalar_select %p634, %s23, 1
          %p636 = scmp.lt.s32.totalorder %s633, 3
          %s637 = scalar_select %p636, %s633, 3
          %s638 = smul.addr %s637, 2
          %s639 = smul.addr %s635, 8
          %s640 = sadd.s32 %s638, %s639
          %s641 = smul.addr %s640, 8
          %s642 = scalar_lea.vmem %s2, %s641
        $region44: #{post_process.1} parent=35 // pred_fallthru
          _
      $region36: #{post_process.1} parent=5 // pred_fallthru
        _
    $region6: #{post_process.1} parent=1 // loop_footer
      %s16 = sadd.s32 1, %s12
    $region7: #{post_process.1} parent=1 // loop_footer_branch
      %11 = sbr.rel target = $region3
    $region8: #{post_process.1} parent=1 // loop_exit
      _
    %643 = vsyncpa [#allocation3], 1
    %s644 = scalar_lea.sflag [#allocation3], 1
    %645 = vsyncpa %s644, 1

</llo_original>
